<compile_context>
chip_gen: v6e
topology: v6e:2x2x1
jax: 0.10.0
libtpu: 0.0.40
codegen_flags: <defaults>
</compile_context>

<pallas_src>
import jax
import jax.numpy as jnp
from jax.experimental import pallas as pl
from jax.experimental.pallas import tpu as pltpu


def _pos2weight_kernel(x_ref, w1_ref, b1_ref, w2_ref, b2_ref, o_ref):
    # x_ref:  (TM, 3)        tile of positions (streamed)
    # w1_ref: (3, H)   f32   full, VMEM-resident
    # b1_ref: (1, H)   f32   full, VMEM-resident
    # w2_ref: (H, OUT) bf16  full, VMEM-resident
    # b2_ref: (1, OUT) f32   full, VMEM-resident
    # o_ref:  (TM, OUT) f32  output tile
    x = x_ref[...]
    w1 = w1_ref[...]

    # First layer: K=3 contraction as three VPU broadcast-FMAs (keeps the MXU
    # free for the real matmul below).
    h = (x[:, 0:1] * w1[0:1, :]
         + x[:, 1:2] * w1[1:2, :]
         + x[:, 2:3] * w1[2:3, :]
         + b1_ref[...])
    h = jnp.maximum(h, 0.0)  # ReLU on VPU

    # Second layer on the MXU: bf16 inputs, f32 accumulation.
    out = jnp.dot(h.astype(jnp.bfloat16), w2_ref[...],
                  preferred_element_type=jnp.float32) + b2_ref[...]
    o_ref[...] = out.astype(o_ref.dtype)


def pos2weight_forward(x, w1, b1, w2, b2, *, tile_m=None):
    """x: (N, 3) float32. Returns (N, K*K*inC*outC) float32."""
    n, in_dim = x.shape
    assert in_dim == 3
    hidden = w1.shape[1]
    out_dim = w2.shape[1]

    if tile_m is None:
        # Large tiles amortize the ~0.35us/step grid overhead, but keep at
        # least 2 grid iterations so a 2-TC chip (v7x) can shard the
        # "parallel" axis across both TensorCores.
        tile_m = min(1024, pl.cdiv(pl.cdiv(n, 2), 128) * 128)
        tile_m = max(tile_m, 128)

    grid = (pl.cdiv(n, tile_m),)

    x = x.astype(jnp.float32)
    w1_f32 = w1.astype(jnp.float32)
    b1_2d = b1.reshape(1, hidden).astype(jnp.float32)
    w2_bf16 = w2.astype(jnp.bfloat16)          # MXU input in bf16
    b2_2d = b2.reshape(1, out_dim).astype(jnp.float32)

    out = pl.pallas_call(
        _pos2weight_kernel,
        out_shape=jax.ShapeDtypeStruct((n, out_dim), jnp.float32),
        grid_spec=pltpu.PrefetchScalarGridSpec(
            num_scalar_prefetch=0,
            grid=grid,
            in_specs=[
                pl.BlockSpec((tile_m, in_dim), lambda i: (i, 0)),    # x (streamed)
                pl.BlockSpec((in_dim, hidden), lambda i: (0, 0)),    # W1 (resident)
                pl.BlockSpec((1, hidden), lambda i: (0, 0)),         # b1 (resident)
                pl.BlockSpec((hidden, out_dim), lambda i: (0, 0)),   # W2 bf16 (resident)
                pl.BlockSpec((1, out_dim), lambda i: (0, 0)),        # b2 (resident)
            ],
            out_specs=pl.BlockSpec((tile_m, out_dim), lambda i: (i, 0)),
        ),
        compiler_params=pltpu.CompilerParams(
            dimension_semantics=("parallel",),
        ),
    )(x, w1_f32, b1_2d, w2_bf16, b2_2d)

    return out


def init_params(key, inC=4, kernel_size=3, outC=3, hidden=256):
    """Deterministic synthetic init matching nn.Linear shapes (stored transposed)."""
    out_dim = kernel_size * kernel_size * inC * outC
    k1, k2, k3, k4 = jax.random.split(key, 4)
    # uniform(-1/sqrt(fan_in), 1/sqrt(fan_in)) like PyTorch's default Linear init
    lim1 = 1.0 / jnp.sqrt(3.0)
    lim2 = 1.0 / jnp.sqrt(float(hidden))
    w1 = jax.random.uniform(k1, (3, hidden), jnp.float32, -lim1, lim1)
    b1 = jax.random.uniform(k2, (hidden,), jnp.float32, -lim1, lim1)
    w2 = jax.random.uniform(k3, (hidden, out_dim), jnp.float32, -lim2, lim2)
    b2 = jax.random.uniform(k4, (out_dim,), jnp.float32, -lim2, lim2)
    return w1, b1, w2, b2


if __name__ == "__main__":
    inC, kernel_size, outC = 4, 3, 3             # out_dim = 3*3*4*3 = 108
    n_positions = 600                            # deliberately NOT a multiple of tile_m

    key = jax.random.PRNGKey(0)
    kx, kp = jax.random.split(key)
    x = jax.random.uniform(kx, (n_positions, 3), jnp.float32)   # relative position codes
    w1, b1, w2, b2 = init_params(kp, inC=inC, kernel_size=kernel_size, outC=outC)

    out = pos2weight_forward(x, w1, b1, w2, b2)
    out = jax.block_until_ready(out)

    # Reference checks (plain JAX).
    # Tight check against a bf16-matmul-matched reference, loose check against
    # the full-f32 reference (the bf16 MXU inputs cost ~1e-3 relative error).
    h_ref = jnp.maximum(x @ w1 + b1, 0.0)
    ref_bf16 = jnp.dot(h_ref.astype(jnp.bfloat16), w2.astype(jnp.bfloat16),
                       preferred_element_type=jnp.float32) + b2
    ref_f32 = h_ref @ w2 + b2

    assert out.shape == (n_positions, kernel_size * kernel_size * inC * outC)
    assert jnp.allclose(out, ref_bf16, atol=1e-4, rtol=1e-4)
    assert jnp.allclose(out, ref_f32, atol=3e-2, rtol=3e-2)

    print("KERNEL_OK")
</pallas_src>

<mosaic_0001>
module attributes {stable_mosaic.version = 11 : i64} {
  func.func @_pos2weight_kernel(%arg0: i32, %arg1: memref<384x3xf32, #tpu.memory_space<vmem>>, %arg2: memref<3x256xf32, #tpu.memory_space<vmem>>, %arg3: memref<1x256xf32, #tpu.memory_space<vmem>>, %arg4: memref<256x108xbf16, #tpu.memory_space<vmem>>, %arg5: memref<1x108xf32, #tpu.memory_space<vmem>>, %arg6: memref<384x108xf32, #tpu.memory_space<vmem>>) attributes {dimension_semantics = [#tpu.dimension_semantics<parallel>], iteration_bounds = array<i64: 2>, scalar_prefetch = 0 : i64, scratch_operands = 0 : i64, tpu.core_type = #tpu.core_type<tc>, window_params = [{transform_indices = @transform_0, window_bounds = array<i64: 384, 3>}, {pipeline_mode = #tpu.pipeline_mode<synchronous>, transform_indices = @transform_1, window_bounds = array<i64: 3, 256>}, {pipeline_mode = #tpu.pipeline_mode<synchronous>, transform_indices = @transform_2, window_bounds = array<i64: 1, 256>}, {pipeline_mode = #tpu.pipeline_mode<synchronous>, transform_indices = @transform_3, window_bounds = array<i64: 256, 108>}, {pipeline_mode = #tpu.pipeline_mode<synchronous>, transform_indices = @transform_4, window_bounds = array<i64: 1, 108>}, {transform_indices = @transform_5, window_bounds = array<i64: 384, 108>}]} {
    %c0 = arith.constant 0 : index
    %c0_0 = arith.constant 0 : index
    %0 = vector.load %arg1[%c0, %c0_0] : memref<384x3xf32, #tpu.memory_space<vmem>>, vector<384x3xf32>
    %c0_1 = arith.constant 0 : index
    %c0_2 = arith.constant 0 : index
    %1 = vector.load %arg2[%c0_1, %c0_2] : memref<3x256xf32, #tpu.memory_space<vmem>>, vector<3x256xf32>
    %2 = vector.extract_strided_slice %0 {offsets = [0, 0], sizes = [384, 1], strides = [1, 1]} : vector<384x3xf32> to vector<384x1xf32>
    %3 = vector.extract_strided_slice %1 {offsets = [0, 0], sizes = [1, 256], strides = [1, 1]} : vector<3x256xf32> to vector<1x256xf32>
    %4 = vector.broadcast %2 : vector<384x1xf32> to vector<384x256xf32>
    %5 = vector.broadcast %3 : vector<1x256xf32> to vector<384x256xf32>
    %6 = arith.mulf %4, %5 : vector<384x256xf32>
    %7 = vector.extract_strided_slice %0 {offsets = [0, 1], sizes = [384, 1], strides = [1, 1]} : vector<384x3xf32> to vector<384x1xf32>
    %8 = vector.extract_strided_slice %1 {offsets = [1, 0], sizes = [1, 256], strides = [1, 1]} : vector<3x256xf32> to vector<1x256xf32>
    %9 = vector.broadcast %7 : vector<384x1xf32> to vector<384x256xf32>
    %10 = vector.broadcast %8 : vector<1x256xf32> to vector<384x256xf32>
    %11 = arith.mulf %9, %10 : vector<384x256xf32>
    %12 = arith.addf %6, %11 : vector<384x256xf32>
    %13 = vector.extract_strided_slice %0 {offsets = [0, 2], sizes = [384, 1], strides = [1, 1]} : vector<384x3xf32> to vector<384x1xf32>
    %14 = vector.extract_strided_slice %1 {offsets = [2, 0], sizes = [1, 256], strides = [1, 1]} : vector<3x256xf32> to vector<1x256xf32>
    %15 = vector.broadcast %13 : vector<384x1xf32> to vector<384x256xf32>
    %16 = vector.broadcast %14 : vector<1x256xf32> to vector<384x256xf32>
    %17 = arith.mulf %15, %16 : vector<384x256xf32>
    %18 = arith.addf %12, %17 : vector<384x256xf32>
    %c0_3 = arith.constant 0 : index
    %c0_4 = arith.constant 0 : index
    %19 = vector.load %arg3[%c0_3, %c0_4] : memref<1x256xf32, #tpu.memory_space<vmem>>, vector<1x256xf32>
    %20 = vector.broadcast %19 : vector<1x256xf32> to vector<384x256xf32>
    %21 = arith.addf %18, %20 : vector<384x256xf32>
    %cst = arith.constant 0.000000e+00 : f32
    %22 = vector.broadcast %cst : f32 to vector<384x256xf32>
    %23 = arith.maximumf %21, %22 : vector<384x256xf32>
    %24 = arith.truncf %23 : vector<384x256xf32> to vector<384x256xbf16>
    %c0_5 = arith.constant 0 : index
    %c0_6 = arith.constant 0 : index
    %25 = vector.load %arg4[%c0_5, %c0_6] : memref<256x108xbf16, #tpu.memory_space<vmem>>, vector<256x108xbf16>
    %cst_7 = arith.constant dense<0.000000e+00> : vector<384x108xf32>
    %26 = tpu.matmul %24, %25, %cst_7 {dimension_numbers = #tpu.dot_dimension_numbers<[1], [0], [0], [1], [0, 0, 1, 1], [], []>} : vector<384x256xbf16>, vector<256x108xbf16>, vector<384x108xf32> -> vector<384x108xf32>
    %c0_8 = arith.constant 0 : index
    %c0_9 = arith.constant 0 : index
    %27 = vector.load %arg5[%c0_8, %c0_9] : memref<1x108xf32, #tpu.memory_space<vmem>>, vector<1x108xf32>
    %28 = vector.broadcast %27 : vector<1x108xf32> to vector<384x108xf32>
    %29 = arith.addf %26, %28 : vector<384x108xf32>
    %c0_10 = arith.constant 0 : index
    %c0_11 = arith.constant 0 : index
    %30 = vector.load %arg6[%c0_10, %c0_11] : memref<384x108xf32, #tpu.memory_space<vmem>>, vector<384x108xf32>
    tpu.vector_store %arg6[%c0_10, %c0_11], %29 {strides = array<i32>} : memref<384x108xf32, #tpu.memory_space<vmem>>, vector<384x108xf32>,
    return
  }
  func.func @transform_0(%arg0: i32) -> (i32, i32) {
    %c0_i32 = arith.constant 0 : i32
    %c0_i32_0 = arith.constant 0 : i32
    return %arg0, %c0_i32 : i32, i32
  }
  func.func @transform_1(%arg0: i32) -> (i32, i32) {
    %c0_i32 = arith.constant 0 : i32
    %c0_i32_0 = arith.constant 0 : i32
    %c0_i32_1 = arith.constant 0 : i32
    return %c0_i32, %c0_i32_0 : i32, i32
  }
  func.func @transform_2(%arg0: i32) -> (i32, i32) {
    %c0_i32 = arith.constant 0 : i32
    %c0_i32_0 = arith.constant 0 : i32
    %c0_i32_1 = arith.constant 0 : i32
    return %c0_i32, %c0_i32_0 : i32, i32
  }
  func.func @transform_3(%arg0: i32) -> (i32, i32) {
    %c0_i32 = arith.constant 0 : i32
    %c0_i32_0 = arith.constant 0 : i32
    %c0_i32_1 = arith.constant 0 : i32
    return %c0_i32, %c0_i32_0 : i32, i32
  }
  func.func @transform_4(%arg0: i32) -> (i32, i32) {
    %c0_i32 = arith.constant 0 : i32
    %c0_i32_0 = arith.constant 0 : i32
    %c0_i32_1 = arith.constant 0 : i32
    return %c0_i32, %c0_i32_0 : i32, i32
  }
  func.func @transform_5(%arg0: i32) -> (i32, i32) {
    %c0_i32 = arith.constant 0 : i32
    %c0_i32_0 = arith.constant 0 : i32
    return %arg0, %c0_i32 : i32, i32
  }
}

</mosaic_0001>

<llo_original>
// kernel: tpu_custom_call.1
$region0: #{tpu_custom_call.1}
  #allocation0 [shape = 'u32[]', space=smem, size = 0x4, offset = 0x4, fixed_abs, tag = 'smem constant byte address 0x4 - core index']
  #allocation1 [shape = 'u32[144,128]{1,0:T(1,128)}', space=vmem, size = 0x12000, scoped, tag = 'internal scratch']
  %s0 = inlined_call_operand.vmem [shape: f32[600,3], index: 0, kind: input, shape index: {}]
  %s1 = inlined_call_operand.vmem [shape: f32[3,256], index: 1, kind: input, shape index: {}]
  %s2 = inlined_call_operand.vmem [shape: f32[1,256], index: 2, kind: input, shape index: {}]
  %s3 = inlined_call_operand.vmem [shape: bf16[256,108], index: 3, kind: input, shape index: {}]
  %s4 = inlined_call_operand.vmem [shape: f32[1,108], index: 4, kind: input, shape index: {}]
  %s5 = inlined_call_operand.vmem [shape: f32[600,108], index: 5, kind: output, shape index: {}]
  %s6 = sld [smem:[#allocation0]]
  $region101: #{tpu_custom_call.1} parent=0
    _
  %s8 = ssub.s32 1, %s6
  %s9 = scalar_select 0, %s8, %s6
  $region1: #{tpu_custom_call.1} parent=0
    #allocation2 [shape = 'u8[393216]{0}', space=vmem, size = 0x60000, scoped, tag = 'output window, operand 0']
    loop: start=0, step=1, limit=4
    $region2: #{tpu_custom_call.1} parent=1 // loop_pre_header
      _
    $region3: #{tpu_custom_call.1} parent=1 // loop_header
      %s11 = sphi 0, %s15
      %p12 = scmp.ge.s32.totalorder %s11, 4
      %s21 = sphi 0, %s23
      %s24 = sphi 0, %s21
      %s25 = sphi 0, %s24
      %s41 = sphi 0, %s25
      %s45 = sphi 0, %s45
      %s47 = sphi 0, %s45
      %s48 = sphi 0, %s47
      %s62 = sphi 0, %s48
      %s66 = sphi 0, %s66
      %s68 = sphi 0, %s66
      %s69 = sphi 0, %s68
      %s83 = sphi 0, %s69
      %s87 = sphi 0, %s87
      %s89 = sphi 0, %s87
      %s90 = sphi 0, %s89
      %s104 = sphi 0, %s90
      %s108 = sphi 0, %s108
      %s110 = sphi 0, %s108
      %s111 = sphi 0, %s110
      %s125 = sphi 0, %s111
      %s131 = sphi 0, %s133
      %s134 = sphi 0, %s131
      %s135 = sphi 0, %s134
      %s151 = sphi 0, %s135
    $region4: #{tpu_custom_call.1} parent=1 // loop_header_branch
      %14 = sbr.rel (%p12) target = $region8
    $region5: #{tpu_custom_call.1} parent=1 // loop_body
      %s16 = ssub.s32 %s11, 1
      %s17 = ssub.s32 %s11, 2
      %s18 = sadd.s32 %s11, 1
      %s19 = ssub.s32 %s11, %s18
      %p20 = scmp.eq.s32.totalorder %s19, 0
      %s22 = sadd.s32 %s21, 1
      %s23 = scalar_select %p20, %s21, %s22
      %p26 = pneg %p20
      %p27 = scmp.eq.s32.totalorder %s11, 1
      %p28 = por %p26, %p27
      %p29 = scmp.ne.s32.totalorder %s21, %s24
      %p30 = scmp.eq.s32.totalorder %s11, 0
      %p31 = por %p29, %p30
      %p32 = scmp.ne.s32.totalorder %s21, %s24
      %p33 = scmp.eq.s32.totalorder %s16, 1
      %p34 = por %p32, %p33
      %p35 = scmp.ne.s32.totalorder %s24, %s25
      %p36 = scmp.eq.s32.totalorder %s16, 0
      %p37 = por %p35, %p36
      %p38 = scmp.ne.s32.totalorder %s24, %s25
      %p39 = scmp.eq.s32.totalorder %s17, 1
      %p40 = por %p38, %p39
      %p42 = scmp.ne.s32.totalorder %s25, %s41
      %p43 = scmp.eq.s32.totalorder %s17, 0
      %p44 = por %p42, %p43
      %s46 = sadd.s32 %s45, 1
      %p49 = scmp.eq.s32.totalorder %s11, 1
      %p50 = scmp.ne.s32.totalorder %s45, %s47
      %p51 = scmp.eq.s32.totalorder %s11, 0
      %p52 = por %p50, %p51
      %p53 = scmp.ne.s32.totalorder %s45, %s47
      %p54 = scmp.eq.s32.totalorder %s16, 1
      %p55 = por %p53, %p54
      %p56 = scmp.ne.s32.totalorder %s47, %s48
      %p57 = scmp.eq.s32.totalorder %s16, 0
      %p58 = por %p56, %p57
      %p59 = scmp.ne.s32.totalorder %s47, %s48
      %p60 = scmp.eq.s32.totalorder %s17, 1
      %p61 = por %p59, %p60
      %p63 = scmp.ne.s32.totalorder %s48, %s62
      %p64 = scmp.eq.s32.totalorder %s17, 0
      %p65 = por %p63, %p64
      %s67 = sadd.s32 %s66, 1
      %p70 = scmp.eq.s32.totalorder %s11, 1
      %p71 = scmp.ne.s32.totalorder %s66, %s68
      %p72 = scmp.eq.s32.totalorder %s11, 0
      %p73 = por %p71, %p72
      %p74 = scmp.ne.s32.totalorder %s66, %s68
      %p75 = scmp.eq.s32.totalorder %s16, 1
      %p76 = por %p74, %p75
      %p77 = scmp.ne.s32.totalorder %s68, %s69
      %p78 = scmp.eq.s32.totalorder %s16, 0
      %p79 = por %p77, %p78
      %p80 = scmp.ne.s32.totalorder %s68, %s69
      %p81 = scmp.eq.s32.totalorder %s17, 1
      %p82 = por %p80, %p81
      %p84 = scmp.ne.s32.totalorder %s69, %s83
      %p85 = scmp.eq.s32.totalorder %s17, 0
      %p86 = por %p84, %p85
      %s88 = sadd.s32 %s87, 1
      %p91 = scmp.eq.s32.totalorder %s11, 1
      %p92 = scmp.ne.s32.totalorder %s87, %s89
      %p93 = scmp.eq.s32.totalorder %s11, 0
      %p94 = por %p92, %p93
      %p95 = scmp.ne.s32.totalorder %s87, %s89
      %p96 = scmp.eq.s32.totalorder %s16, 1
      %p97 = por %p95, %p96
      %p98 = scmp.ne.s32.totalorder %s89, %s90
      %p99 = scmp.eq.s32.totalorder %s16, 0
      %p100 = por %p98, %p99
      %p101 = scmp.ne.s32.totalorder %s89, %s90
      %p102 = scmp.eq.s32.totalorder %s17, 1
      %p103 = por %p101, %p102
      %p105 = scmp.ne.s32.totalorder %s90, %s104
      %p106 = scmp.eq.s32.totalorder %s17, 0
      %p107 = por %p105, %p106
      %s109 = sadd.s32 %s108, 1
      %p112 = scmp.eq.s32.totalorder %s11, 1
      %p113 = scmp.ne.s32.totalorder %s108, %s110
      %p114 = scmp.eq.s32.totalorder %s11, 0
      %p115 = por %p113, %p114
      %p116 = scmp.ne.s32.totalorder %s108, %s110
      %p117 = scmp.eq.s32.totalorder %s16, 1
      %p118 = por %p116, %p117
      %p119 = scmp.ne.s32.totalorder %s110, %s111
      %p120 = scmp.eq.s32.totalorder %s16, 0
      %p121 = por %p119, %p120
      %p122 = scmp.ne.s32.totalorder %s110, %s111
      %p123 = scmp.eq.s32.totalorder %s17, 1
      %p124 = por %p122, %p123
      %p126 = scmp.ne.s32.totalorder %s111, %s125
      %p127 = scmp.eq.s32.totalorder %s17, 0
      %p128 = por %p126, %p127
      %s129 = ssub.s32 %s11, %s18
      %p130 = scmp.eq.s32.totalorder %s129, 0
      %s132 = sadd.s32 %s131, 1
      %s133 = scalar_select %p130, %s131, %s132
      %p136 = pneg %p130
      %p137 = scmp.eq.s32.totalorder %s11, 1
      %p138 = por %p136, %p137
      %p139 = scmp.ne.s32.totalorder %s131, %s134
      %p140 = scmp.eq.s32.totalorder %s11, 0
      %p141 = por %p139, %p140
      %p142 = scmp.ne.s32.totalorder %s131, %s134
      %p143 = scmp.eq.s32.totalorder %s16, 1
      %p144 = por %p142, %p143
      %p145 = scmp.ne.s32.totalorder %s134, %s135
      %p146 = scmp.eq.s32.totalorder %s16, 0
      %p147 = por %p145, %p146
      %p148 = scmp.ne.s32.totalorder %s134, %s135
      %p149 = scmp.eq.s32.totalorder %s17, 1
      %p150 = por %p148, %p149
      %p152 = scmp.ne.s32.totalorder %s135, %s151
      %p153 = scmp.eq.s32.totalorder %s17, 0
      %p154 = por %p152, %p153
      %p155 = scmp.le.s32.totalorder 1, %s11
      %p156 = scmp.lt.s32.totalorder %s11, 3
      %p157 = pnand %p155, %p156
      %p158 = pneg %p157
      // Predicated region
      $region9: #{tpu_custom_call.1} parent=5 // pred_check
        _
      $region10: #{tpu_custom_call.1} parent=5 // pred_check_branch
        %160 = sbr.rel (%p157) target = $region12
      $region11: #{tpu_custom_call.1} parent=5 // pred_region
        %s161 = ssub.s32 %s11, 1
        // Predicated region
        $region13: #{tpu_custom_call.1} parent=11 // pred_check
          %p162 = pneg %p58
        $region14: #{tpu_custom_call.1} parent=11 // pred_check_branch
          %164 = sbr.rel (%p162) target = $region16
        $region15: #{tpu_custom_call.1} parent=11 // pred_region
          _
        $region16: #{tpu_custom_call.1} parent=11 // pred_fallthru
          _
        // Predicated region
        $region17: #{tpu_custom_call.1} parent=11 // pred_check
          %p165 = pneg %p79
        $region18: #{tpu_custom_call.1} parent=11 // pred_check_branch
          %167 = sbr.rel (%p165) target = $region20
        $region19: #{tpu_custom_call.1} parent=11 // pred_region
          _
        $region20: #{tpu_custom_call.1} parent=11 // pred_fallthru
          _
        // Predicated region
        $region21: #{tpu_custom_call.1} parent=11 // pred_check
          %p168 = pneg %p100
        $region22: #{tpu_custom_call.1} parent=11 // pred_check_branch
          %170 = sbr.rel (%p168) target = $region24
        $region23: #{tpu_custom_call.1} parent=11 // pred_region
          _
        $region24: #{tpu_custom_call.1} parent=11 // pred_fallthru
          _
        // Predicated region
        $region25: #{tpu_custom_call.1} parent=11 // pred_check
          %p171 = pneg %p121
        $region26: #{tpu_custom_call.1} parent=11 // pred_check_branch
          %173 = sbr.rel (%p171) target = $region28
        $region27: #{tpu_custom_call.1} parent=11 // pred_region
          _
        $region28: #{tpu_custom_call.1} parent=11 // pred_fallthru
          _
      $region12: #{tpu_custom_call.1} parent=5 // pred_fallthru
        _
      %p174 = scmp.lt.s32.totalorder %s11, 2
      // Predicated region
      $region29: #{tpu_custom_call.1} parent=5 // pred_check
        %p175 = pneg %p174
      $region30: #{tpu_custom_call.1} parent=5 // pred_check_branch
        %177 = sbr.rel (%p175) target = $region32
      $region31: #{tpu_custom_call.1} parent=5 // pred_region
        // Predicated region
        $region33: #{tpu_custom_call.1} parent=31 // pred_check
          %p178 = pneg %p31
        $region34: #{tpu_custom_call.1} parent=31 // pred_check_branch
          %180 = sbr.rel (%p178) target = $region36
        $region35: #{tpu_custom_call.1} parent=31 // pred_region
          %s181 = smul.u32 48, %s11
          %s182 = ssub.s32 75, %s181
          %p183 = scmp.lt.s32.totalorder %s182, 48
          %s184 = scalar_select %p183, %s182, 48
          %s185 = smul.u32 128, %s184
          %p186 = scmp.lt.s32.totalorder %s181, 74
          %s187 = scalar_select %p186, %s181, 74
          %s188 = smul.addr %s187, 8
          %s189 = scalar_lea.vmem %s0, %s188
          %s190 = smul.u32 48, %s11
          %s191 = ssub.s32 75, %s190
          %p192 = scmp.lt.s32.totalorder %s191, 48
          %s193 = scalar_select %p192, %s191, 48
          %s194 = smul.u32 128, %s193
        $region36: #{tpu_custom_call.1} parent=31 // pred_fallthru
          _
      $region32: #{tpu_custom_call.1} parent=5 // pred_fallthru
        _
      %p195 = scmp.le.s32.totalorder 1, %s11
      %p196 = scmp.lt.s32.totalorder %s11, 3
      %p197 = pnand %p195, %p196
      %p198 = pneg %p197
      // Predicated region
      $region37: #{tpu_custom_call.1} parent=5 // pred_check
        _
      $region38: #{tpu_custom_call.1} parent=5 // pred_check_branch
        %200 = sbr.rel (%p197) target = $region40
      $region39: #{tpu_custom_call.1} parent=5 // pred_region
        %s201 = ssub.s32 %s11, 1
        %s202 = smul.u32 48, %s16
        %s203 = ssub.s32 75, %s202
        %p204 = scmp.lt.s32.totalorder %s203, 48
        %s205 = scalar_select %p204, %s203, 48
        %s206 = smul.u32 128, %s205
        %p207 = scmp.lt.s32.totalorder %s202, 74
        %s208 = scalar_select %p207, %s202, 74
        %s209 = smul.addr %s208, 8
        %s210 = scalar_lea.vmem %s0, %s209
        %p211 = pneg %p37
        %p212 = pneg %p34
        %p213 = pneg %p58
        %p214 = pneg %p55
        %p215 = pneg %p79
        %p216 = pneg %p76
        %p217 = pneg %p100
        %p218 = pneg %p97
        %p219 = pneg %p121
        %p220 = pneg %p118
        %p221 = pneg %p147
        %p222 = pneg %p144
        %s223 = sand.u32 %s134, 1
        %s224 = sand.u32 %s134, 1
        %s225 = smul.addr %s224, 384
        %s226 = scalar_lea.vmem [#allocation2], %s225
        %s227 = smul.u32 48, %s16
        %s228 = ssub.s32 75, %s227
        %p229 = scmp.lt.s32.totalorder %s228, 48
        %s230 = scalar_select %p229, %s228, 48
        %s231 = smul.u32 128, %s230
        %p232 = scmp.lt.s32.totalorder %s227, 74
        %s233 = scalar_select %p232, %s227, 74
        %s234 = smul.addr %s233, 8
        %s235 = scalar_lea.vmem %s0, %s234
        %s236 = smul.u32 48, %s16
        %s237 = ssub.s32 75, %s236
        %p238 = scmp.lt.s32.totalorder %s237, 48
        %s239 = scalar_select %p238, %s237, 48
        %s240 = smul.u32 128, %s239
        %s241 = smul.u32 48, %s16
        %s242 = ssub.s32 75, %s241
        %p243 = scmp.lt.s32.totalorder %s242, 48
        %s244 = scalar_select %p243, %s242, 48
        %s245 = smul.u32 128, %s244
        %v247 = vld [vmem:[%s235] sm:$0xff]
        %v248 = vld [vmem:[%s235 + $0x8] sm:$0xff]
        %v249 = vld [vmem:[%s235 + $0x10] sm:$0xff]
        %v250 = vld [vmem:[%s235 + $0x18] sm:$0xff]
        %v251 = vld [vmem:[%s235 + $0x20] sm:$0xff]
        %v252 = vld [vmem:[%s235 + $0x28] sm:$0xff]
        %v253 = vld [vmem:[%s235 + $0x30] sm:$0xff]
        %v254 = vld [vmem:[%s235 + $0x38] sm:$0xff]
        %v255 = vld [vmem:[%s235 + $0x40] sm:$0xff]
        %v256 = vld [vmem:[%s235 + $0x48] sm:$0xff]
        %v257 = vld [vmem:[%s235 + $0x50] sm:$0xff]
        %v258 = vld [vmem:[%s235 + $0x58] sm:$0xff]
        %v259 = vld [vmem:[%s235 + $0x60] sm:$0xff]
        %v260 = vld [vmem:[%s235 + $0x68] sm:$0xff]
        %v261 = vld [vmem:[%s235 + $0x70] sm:$0xff]
        %v262 = vld [vmem:[%s235 + $0x78] sm:$0xff]
        %v263 = vld [vmem:[%s235 + $0x80] sm:$0xff]
        %v264 = vld [vmem:[%s235 + $0x88] sm:$0xff]
        %v265 = vld [vmem:[%s235 + $0x90] sm:$0xff]
        %v266 = vld [vmem:[%s235 + $0x98] sm:$0xff]
        %v267 = vld [vmem:[%s235 + $0xa0] sm:$0xff]
        %v268 = vld [vmem:[%s235 + $0xa8] sm:$0xff]
        %v269 = vld [vmem:[%s235 + $0xb0] sm:$0xff]
        %v270 = vld [vmem:[%s235 + $0xb8] sm:$0xff]
        %v271 = vld [vmem:[%s235 + $0xc0] sm:$0xff]
        %v272 = vld [vmem:[%s235 + $0xc8] sm:$0xff]
        %v273 = vld [vmem:[%s235 + $0xd0] sm:$0xff]
        %v274 = vld [vmem:[%s235 + $0xd8] sm:$0xff]
        %v275 = vld [vmem:[%s235 + $0xe0] sm:$0xff]
        %v276 = vld [vmem:[%s235 + $0xe8] sm:$0xff]
        %v277 = vld [vmem:[%s235 + $0xf0] sm:$0xff]
        %v278 = vld [vmem:[%s235 + $0xf8] sm:$0xff]
        %v279 = vld [vmem:[%s235 + $0x100] sm:$0xff]
        %v280 = vld [vmem:[%s235 + $0x108] sm:$0xff]
        %v281 = vld [vmem:[%s235 + $0x110] sm:$0xff]
        %v282 = vld [vmem:[%s235 + $0x118] sm:$0xff]
        %v283 = vld [vmem:[%s235 + $0x120] sm:$0xff]
        %v284 = vld [vmem:[%s235 + $0x128] sm:$0xff]
        %v285 = vld [vmem:[%s235 + $0x130] sm:$0xff]
        %v286 = vld [vmem:[%s235 + $0x138] sm:$0xff]
        %v287 = vld [vmem:[%s235 + $0x140] sm:$0xff]
        %v288 = vld [vmem:[%s235 + $0x148] sm:$0xff]
        %v289 = vld [vmem:[%s235 + $0x150] sm:$0xff]
        %v290 = vld [vmem:[%s235 + $0x158] sm:$0xff]
        %v291 = vld [vmem:[%s235 + $0x160] sm:$0xff]
        %v292 = vld [vmem:[%s235 + $0x168] sm:$0xff]
        %v293 = vld [vmem:[%s235 + $0x170] sm:$0xff]
        %v294 = vld [vmem:[%s235 + $0x178] sm:$0xff]
        %v295 = vld [vmem:[%s1] sm:$0x77]
        %297 = vset.pattern.permute.xlu0 0
        %298 = vperm.xlu0 %297, %v247
        %v299 = vpop.permute.xlu0 %298
        %302 = vset.pattern.permute.xlu0 0
        %303 = vperm.xlu0 %302, %v248
        %v304 = vpop.permute.xlu0 %303
        %307 = vset.pattern.permute.xlu0 0
        %308 = vperm.xlu0 %307, %v249
        %v309 = vpop.permute.xlu0 %308
        %312 = vset.pattern.permute.xlu0 0
        %313 = vperm.xlu0 %312, %v250
        %v314 = vpop.permute.xlu0 %313
        %317 = vset.pattern.permute.xlu0 0
        %318 = vperm.xlu0 %317, %v251
        %v319 = vpop.permute.xlu0 %318
        %322 = vset.pattern.permute.xlu0 0
        %323 = vperm.xlu0 %322, %v252
        %v324 = vpop.permute.xlu0 %323
        %327 = vset.pattern.permute.xlu0 0
        %328 = vperm.xlu0 %327, %v253
        %v329 = vpop.permute.xlu0 %328
        %332 = vset.pattern.permute.xlu0 0
        %333 = vperm.xlu0 %332, %v254
        %v334 = vpop.permute.xlu0 %333
        %337 = vset.pattern.permute.xlu0 0
        %338 = vperm.xlu0 %337, %v255
        %v339 = vpop.permute.xlu0 %338
        %342 = vset.pattern.permute.xlu0 0
        %343 = vperm.xlu0 %342, %v256
        %v344 = vpop.permute.xlu0 %343
        %347 = vset.pattern.permute.xlu0 0
        %348 = vperm.xlu0 %347, %v257
        %v349 = vpop.permute.xlu0 %348
        %352 = vset.pattern.permute.xlu0 0
        %353 = vperm.xlu0 %352, %v258
        %v354 = vpop.permute.xlu0 %353
        %357 = vset.pattern.permute.xlu0 0
        %358 = vperm.xlu0 %357, %v259
        %v359 = vpop.permute.xlu0 %358
        %362 = vset.pattern.permute.xlu0 0
        %363 = vperm.xlu0 %362, %v260
        %v364 = vpop.permute.xlu0 %363
        %367 = vset.pattern.permute.xlu0 0
        %368 = vperm.xlu0 %367, %v261
        %v369 = vpop.permute.xlu0 %368
        %372 = vset.pattern.permute.xlu0 0
        %373 = vperm.xlu0 %372, %v262
        %v374 = vpop.permute.xlu0 %373
        %377 = vset.pattern.permute.xlu0 0
        %378 = vperm.xlu0 %377, %v263
        %v379 = vpop.permute.xlu0 %378
        %382 = vset.pattern.permute.xlu0 0
        %383 = vperm.xlu0 %382, %v264
        %v384 = vpop.permute.xlu0 %383
        %387 = vset.pattern.permute.xlu0 0
        %388 = vperm.xlu0 %387, %v265
        %v389 = vpop.permute.xlu0 %388
        %392 = vset.pattern.permute.xlu0 0
        %393 = vperm.xlu0 %392, %v266
        %v394 = vpop.permute.xlu0 %393
        %397 = vset.pattern.permute.xlu0 0
        %398 = vperm.xlu0 %397, %v267
        %v399 = vpop.permute.xlu0 %398
        %402 = vset.pattern.permute.xlu0 0
        %403 = vperm.xlu0 %402, %v268
        %v404 = vpop.permute.xlu0 %403
        %407 = vset.pattern.permute.xlu0 0
        %408 = vperm.xlu0 %407, %v269
        %v409 = vpop.permute.xlu0 %408
        %412 = vset.pattern.permute.xlu0 0
        %413 = vperm.xlu0 %412, %v270
        %v414 = vpop.permute.xlu0 %413
        %417 = vset.pattern.permute.xlu0 0
        %418 = vperm.xlu0 %417, %v271
        %v419 = vpop.permute.xlu0 %418
        %422 = vset.pattern.permute.xlu0 0
        %423 = vperm.xlu0 %422, %v272
        %v424 = vpop.permute.xlu0 %423
        %427 = vset.pattern.permute.xlu0 0
        %428 = vperm.xlu0 %427, %v273
        %v429 = vpop.permute.xlu0 %428
        %432 = vset.pattern.permute.xlu0 0
        %433 = vperm.xlu0 %432, %v274
        %v434 = vpop.permute.xlu0 %433
        %437 = vset.pattern.permute.xlu0 0
        %438 = vperm.xlu0 %437, %v275
        %v439 = vpop.permute.xlu0 %438
        %442 = vset.pattern.permute.xlu0 0
        %443 = vperm.xlu0 %442, %v276
        %v444 = vpop.permute.xlu0 %443
        %447 = vset.pattern.permute.xlu0 0
        %448 = vperm.xlu0 %447, %v277
        %v449 = vpop.permute.xlu0 %448
        %452 = vset.pattern.permute.xlu0 0
        %453 = vperm.xlu0 %452, %v278
        %v454 = vpop.permute.xlu0 %453
        %457 = vset.pattern.permute.xlu0 0
        %458 = vperm.xlu0 %457, %v279
        %v459 = vpop.permute.xlu0 %458
        %462 = vset.pattern.permute.xlu0 0
        %463 = vperm.xlu0 %462, %v280
        %v464 = vpop.permute.xlu0 %463
        %467 = vset.pattern.permute.xlu0 0
        %468 = vperm.xlu0 %467, %v281
        %v469 = vpop.permute.xlu0 %468
        %472 = vset.pattern.permute.xlu0 0
        %473 = vperm.xlu0 %472, %v282
        %v474 = vpop.permute.xlu0 %473
        %477 = vset.pattern.permute.xlu0 0
        %478 = vperm.xlu0 %477, %v283
        %v479 = vpop.permute.xlu0 %478
        %482 = vset.pattern.permute.xlu0 0
        %483 = vperm.xlu0 %482, %v284
        %v484 = vpop.permute.xlu0 %483
        %487 = vset.pattern.permute.xlu0 0
        %488 = vperm.xlu0 %487, %v285
        %v489 = vpop.permute.xlu0 %488
        %492 = vset.pattern.permute.xlu0 0
        %493 = vperm.xlu0 %492, %v286
        %v494 = vpop.permute.xlu0 %493
        %497 = vset.pattern.permute.xlu0 0
        %498 = vperm.xlu0 %497, %v287
        %v499 = vpop.permute.xlu0 %498
        %502 = vset.pattern.permute.xlu0 0
        %503 = vperm.xlu0 %502, %v288
        %v504 = vpop.permute.xlu0 %503
        %507 = vset.pattern.permute.xlu0 0
        %508 = vperm.xlu0 %507, %v289
        %v509 = vpop.permute.xlu0 %508
        %512 = vset.pattern.permute.xlu0 0
        %513 = vperm.xlu0 %512, %v290
        %v514 = vpop.permute.xlu0 %513
        %517 = vset.pattern.permute.xlu0 0
        %518 = vperm.xlu0 %517, %v291
        %v519 = vpop.permute.xlu0 %518
        %522 = vset.pattern.permute.xlu0 0
        %523 = vperm.xlu0 %522, %v292
        %v524 = vpop.permute.xlu0 %523
        %527 = vset.pattern.permute.xlu0 0
        %528 = vperm.xlu0 %527, %v293
        %v529 = vpop.permute.xlu0 %528
        %532 = vset.pattern.permute.xlu0 0
        %533 = vperm.xlu0 %532, %v294
        %v534 = vpop.permute.xlu0 %533
        %v537 = vlaneseq
        %v538 = vshrl.u32 %v537, 7
        %v539 = vsub.s32 0, %v538
        %v540 = vrot.slane %v295, %v539
        %v541 = vlaneseq
        %v542 = vshrl.u32 %v541, 7
        %v543 = vsub.s32 4, %v542
        %v544 = vrot.slane %v295, %v543
        %v547 = vlaneseq
        %v548 = vshrl.u32 %v547, 7
        %v549 = vsub.s32 0, %v548
        %v550 = vrot.slane %v540, %v549
        %v551 = vlaneseq
        %v552 = vshrl.u32 %v551, 7
        %v553 = vsub.s32 0, %v552
        %v554 = vrot.slane %v544, %v553
        %v555 = vmul.f32 %v299, %v550
        %v556 = vmul.f32 %v299, %v554
        %v557 = vmul.f32 %v304, %v550
        %v558 = vmul.f32 %v304, %v554
        %v559 = vmul.f32 %v309, %v550
        %v560 = vmul.f32 %v309, %v554
        %v561 = vmul.f32 %v314, %v550
        %v562 = vmul.f32 %v314, %v554
        %v563 = vmul.f32 %v319, %v550
        %v564 = vmul.f32 %v319, %v554
        %v565 = vmul.f32 %v324, %v550
        %v566 = vmul.f32 %v324, %v554
        %v567 = vmul.f32 %v329, %v550
        %v568 = vmul.f32 %v329, %v554
        %v569 = vmul.f32 %v334, %v550
        %v570 = vmul.f32 %v334, %v554
        %v571 = vmul.f32 %v339, %v550
        %v572 = vmul.f32 %v339, %v554
        %v573 = vmul.f32 %v344, %v550
        %v574 = vmul.f32 %v344, %v554
        %v575 = vmul.f32 %v349, %v550
        %v576 = vmul.f32 %v349, %v554
        %v577 = vmul.f32 %v354, %v550
        %v578 = vmul.f32 %v354, %v554
        %v579 = vmul.f32 %v359, %v550
        %v580 = vmul.f32 %v359, %v554
        %v581 = vmul.f32 %v364, %v550
        %v582 = vmul.f32 %v364, %v554
        %v583 = vmul.f32 %v369, %v550
        %v584 = vmul.f32 %v369, %v554
        %v585 = vmul.f32 %v374, %v550
        %v586 = vmul.f32 %v374, %v554
        %v587 = vmul.f32 %v379, %v550
        %v588 = vmul.f32 %v379, %v554
        %v589 = vmul.f32 %v384, %v550
        %v590 = vmul.f32 %v384, %v554
        %v591 = vmul.f32 %v389, %v550
        %v592 = vmul.f32 %v389, %v554
        %v593 = vmul.f32 %v394, %v550
        %v594 = vmul.f32 %v394, %v554
        %v595 = vmul.f32 %v399, %v550
        %v596 = vmul.f32 %v399, %v554
        %v597 = vmul.f32 %v404, %v550
        %v598 = vmul.f32 %v404, %v554
        %v599 = vmul.f32 %v409, %v550
        %v600 = vmul.f32 %v409, %v554
        %v601 = vmul.f32 %v414, %v550
        %v602 = vmul.f32 %v414, %v554
        %v603 = vmul.f32 %v419, %v550
        %v604 = vmul.f32 %v419, %v554
        %v605 = vmul.f32 %v424, %v550
        %v606 = vmul.f32 %v424, %v554
        %v607 = vmul.f32 %v429, %v550
        %v608 = vmul.f32 %v429, %v554
        %v609 = vmul.f32 %v434, %v550
        %v610 = vmul.f32 %v434, %v554
        %v611 = vmul.f32 %v439, %v550
        %v612 = vmul.f32 %v439, %v554
        %v613 = vmul.f32 %v444, %v550
        %v614 = vmul.f32 %v444, %v554
        %v615 = vmul.f32 %v449, %v550
        %v616 = vmul.f32 %v449, %v554
        %v617 = vmul.f32 %v454, %v550
        %v618 = vmul.f32 %v454, %v554
        %v619 = vmul.f32 %v459, %v550
        %v620 = vmul.f32 %v459, %v554
        %v621 = vmul.f32 %v464, %v550
        %v622 = vmul.f32 %v464, %v554
        %v623 = vmul.f32 %v469, %v550
        %v624 = vmul.f32 %v469, %v554
        %v625 = vmul.f32 %v474, %v550
        %v626 = vmul.f32 %v474, %v554
        %v627 = vmul.f32 %v479, %v550
        %v628 = vmul.f32 %v479, %v554
        %v629 = vmul.f32 %v484, %v550
        %v630 = vmul.f32 %v484, %v554
        %v631 = vmul.f32 %v489, %v550
        %v632 = vmul.f32 %v489, %v554
        %v633 = vmul.f32 %v494, %v550
        %v634 = vmul.f32 %v494, %v554
        %v635 = vmul.f32 %v499, %v550
        %v636 = vmul.f32 %v499, %v554
        %v637 = vmul.f32 %v504, %v550
        %v638 = vmul.f32 %v504, %v554
        %v639 = vmul.f32 %v509, %v550
        %v640 = vmul.f32 %v509, %v554
        %v641 = vmul.f32 %v514, %v550
        %v642 = vmul.f32 %v514, %v554
        %v643 = vmul.f32 %v519, %v550
        %v644 = vmul.f32 %v519, %v554
        %v645 = vmul.f32 %v524, %v550
        %v646 = vmul.f32 %v524, %v554
        %v647 = vmul.f32 %v529, %v550
        %v648 = vmul.f32 %v529, %v554
        %v649 = vmul.f32 %v534, %v550
        %v650 = vmul.f32 %v534, %v554
        %651 = vset.pattern.permute.xlu0 1
        %652 = vperm.xlu0 %651, %v247
        %v653 = vpop.permute.xlu0 %652
        %655 = vset.pattern.permute.xlu0 1
        %656 = vperm.xlu0 %655, %v248
        %v657 = vpop.permute.xlu0 %656
        %659 = vset.pattern.permute.xlu0 1
        %660 = vperm.xlu0 %659, %v249
        %v661 = vpop.permute.xlu0 %660
        %663 = vset.pattern.permute.xlu0 1
        %664 = vperm.xlu0 %663, %v250
        %v665 = vpop.permute.xlu0 %664
        %667 = vset.pattern.permute.xlu0 1
        %668 = vperm.xlu0 %667, %v251
        %v669 = vpop.permute.xlu0 %668
        %671 = vset.pattern.permute.xlu0 1
        %672 = vperm.xlu0 %671, %v252
        %v673 = vpop.permute.xlu0 %672
        %675 = vset.pattern.permute.xlu0 1
        %676 = vperm.xlu0 %675, %v253
        %v677 = vpop.permute.xlu0 %676
        %679 = vset.pattern.permute.xlu0 1
        %680 = vperm.xlu0 %679, %v254
        %v681 = vpop.permute.xlu0 %680
        %683 = vset.pattern.permute.xlu0 1
        %684 = vperm.xlu0 %683, %v255
        %v685 = vpop.permute.xlu0 %684
        %687 = vset.pattern.permute.xlu0 1
        %688 = vperm.xlu0 %687, %v256
        %v689 = vpop.permute.xlu0 %688
        %691 = vset.pattern.permute.xlu0 1
        %692 = vperm.xlu0 %691, %v257
        %v693 = vpop.permute.xlu0 %692
        %695 = vset.pattern.permute.xlu0 1
        %696 = vperm.xlu0 %695, %v258
        %v697 = vpop.permute.xlu0 %696
        %699 = vset.pattern.permute.xlu0 1
        %700 = vperm.xlu0 %699, %v259
        %v701 = vpop.permute.xlu0 %700
        %703 = vset.pattern.permute.xlu0 1
        %704 = vperm.xlu0 %703, %v260
        %v705 = vpop.permute.xlu0 %704
        %707 = vset.pattern.permute.xlu0 1
        %708 = vperm.xlu0 %707, %v261
        %v709 = vpop.permute.xlu0 %708
        %711 = vset.pattern.permute.xlu0 1
        %712 = vperm.xlu0 %711, %v262
        %v713 = vpop.permute.xlu0 %712
        %715 = vset.pattern.permute.xlu0 1
        %716 = vperm.xlu0 %715, %v263
        %v717 = vpop.permute.xlu0 %716
        %719 = vset.pattern.permute.xlu0 1
        %720 = vperm.xlu0 %719, %v264
        %v721 = vpop.permute.xlu0 %720
        %723 = vset.pattern.permute.xlu0 1
        %724 = vperm.xlu0 %723, %v265
        %v725 = vpop.permute.xlu0 %724
        %727 = vset.pattern.permute.xlu0 1
        %728 = vperm.xlu0 %727, %v266
        %v729 = vpop.permute.xlu0 %728
        %731 = vset.pattern.permute.xlu0 1
        %732 = vperm.xlu0 %731, %v267
        %v733 = vpop.permute.xlu0 %732
        %735 = vset.pattern.permute.xlu0 1
        %736 = vperm.xlu0 %735, %v268
        %v737 = vpop.permute.xlu0 %736
        %739 = vset.pattern.permute.xlu0 1
        %740 = vperm.xlu0 %739, %v269
        %v741 = vpop.permute.xlu0 %740
        %743 = vset.pattern.permute.xlu0 1
        %744 = vperm.xlu0 %743, %v270
        %v745 = vpop.permute.xlu0 %744
        %747 = vset.pattern.permute.xlu0 1
        %748 = vperm.xlu0 %747, %v271
        %v749 = vpop.permute.xlu0 %748
        %751 = vset.pattern.permute.xlu0 1
        %752 = vperm.xlu0 %751, %v272
        %v753 = vpop.permute.xlu0 %752
        %755 = vset.pattern.permute.xlu0 1
        %756 = vperm.xlu0 %755, %v273
        %v757 = vpop.permute.xlu0 %756
        %759 = vset.pattern.permute.xlu0 1
        %760 = vperm.xlu0 %759, %v274
        %v761 = vpop.permute.xlu0 %760
        %763 = vset.pattern.permute.xlu0 1
        %764 = vperm.xlu0 %763, %v275
        %v765 = vpop.permute.xlu0 %764
        %767 = vset.pattern.permute.xlu0 1
        %768 = vperm.xlu0 %767, %v276
        %v769 = vpop.permute.xlu0 %768
        %771 = vset.pattern.permute.xlu0 1
        %772 = vperm.xlu0 %771, %v277
        %v773 = vpop.permute.xlu0 %772
        %775 = vset.pattern.permute.xlu0 1
        %776 = vperm.xlu0 %775, %v278
        %v777 = vpop.permute.xlu0 %776
        %779 = vset.pattern.permute.xlu0 1
        %780 = vperm.xlu0 %779, %v279
        %v781 = vpop.permute.xlu0 %780
        %783 = vset.pattern.permute.xlu0 1
        %784 = vperm.xlu0 %783, %v280
        %v785 = vpop.permute.xlu0 %784
        %787 = vset.pattern.permute.xlu0 1
        %788 = vperm.xlu0 %787, %v281
        %v789 = vpop.permute.xlu0 %788
        %791 = vset.pattern.permute.xlu0 1
        %792 = vperm.xlu0 %791, %v282
        %v793 = vpop.permute.xlu0 %792
        %795 = vset.pattern.permute.xlu0 1
        %796 = vperm.xlu0 %795, %v283
        %v797 = vpop.permute.xlu0 %796
        %799 = vset.pattern.permute.xlu0 1
        %800 = vperm.xlu0 %799, %v284
        %v801 = vpop.permute.xlu0 %800
        %803 = vset.pattern.permute.xlu0 1
        %804 = vperm.xlu0 %803, %v285
        %v805 = vpop.permute.xlu0 %804
        %807 = vset.pattern.permute.xlu0 1
        %808 = vperm.xlu0 %807, %v286
        %v809 = vpop.permute.xlu0 %808
        %811 = vset.pattern.permute.xlu0 1
        %812 = vperm.xlu0 %811, %v287
        %v813 = vpop.permute.xlu0 %812
        %815 = vset.pattern.permute.xlu0 1
        %816 = vperm.xlu0 %815, %v288
        %v817 = vpop.permute.xlu0 %816
        %819 = vset.pattern.permute.xlu0 1
        %820 = vperm.xlu0 %819, %v289
        %v821 = vpop.permute.xlu0 %820
        %823 = vset.pattern.permute.xlu0 1
        %824 = vperm.xlu0 %823, %v290
        %v825 = vpop.permute.xlu0 %824
        %827 = vset.pattern.permute.xlu0 1
        %828 = vperm.xlu0 %827, %v291
        %v829 = vpop.permute.xlu0 %828
        %831 = vset.pattern.permute.xlu0 1
        %832 = vperm.xlu0 %831, %v292
        %v833 = vpop.permute.xlu0 %832
        %835 = vset.pattern.permute.xlu0 1
        %836 = vperm.xlu0 %835, %v293
        %v837 = vpop.permute.xlu0 %836
        %839 = vset.pattern.permute.xlu0 1
        %840 = vperm.xlu0 %839, %v294
        %v841 = vpop.permute.xlu0 %840
        %v843 = vlaneseq
        %v844 = vshrl.u32 %v843, 7
        %v845 = vsub.s32 1, %v844
        %v846 = vrot.slane %v295, %v845
        %v847 = vlaneseq
        %v848 = vshrl.u32 %v847, 7
        %v849 = vsub.s32 5, %v848
        %v850 = vrot.slane %v295, %v849
        %v853 = vlaneseq
        %v854 = vshrl.u32 %v853, 7
        %v855 = vsub.s32 1, %v854
        %v856 = vrot.slane %v846, %v855
        %v857 = vlaneseq
        %v858 = vshrl.u32 %v857, 7
        %v859 = vsub.s32 1, %v858
        %v860 = vrot.slane %v850, %v859
        %v861 = vmul.f32 %v653, %v856
        %v862 = vmul.f32 %v653, %v860
        %v863 = vmul.f32 %v657, %v856
        %v864 = vmul.f32 %v657, %v860
        %v865 = vmul.f32 %v661, %v856
        %v866 = vmul.f32 %v661, %v860
        %v867 = vmul.f32 %v665, %v856
        %v868 = vmul.f32 %v665, %v860
        %v869 = vmul.f32 %v669, %v856
        %v870 = vmul.f32 %v669, %v860
        %v871 = vmul.f32 %v673, %v856
        %v872 = vmul.f32 %v673, %v860
        %v873 = vmul.f32 %v677, %v856
        %v874 = vmul.f32 %v677, %v860
        %v875 = vmul.f32 %v681, %v856
        %v876 = vmul.f32 %v681, %v860
        %v877 = vmul.f32 %v685, %v856
        %v878 = vmul.f32 %v685, %v860
        %v879 = vmul.f32 %v689, %v856
        %v880 = vmul.f32 %v689, %v860
        %v881 = vmul.f32 %v693, %v856
        %v882 = vmul.f32 %v693, %v860
        %v883 = vmul.f32 %v697, %v856
        %v884 = vmul.f32 %v697, %v860
        %v885 = vmul.f32 %v701, %v856
        %v886 = vmul.f32 %v701, %v860
        %v887 = vmul.f32 %v705, %v856
        %v888 = vmul.f32 %v705, %v860
        %v889 = vmul.f32 %v709, %v856
        %v890 = vmul.f32 %v709, %v860
        %v891 = vmul.f32 %v713, %v856
        %v892 = vmul.f32 %v713, %v860
        %v893 = vmul.f32 %v717, %v856
        %v894 = vmul.f32 %v717, %v860
        %v895 = vmul.f32 %v721, %v856
        %v896 = vmul.f32 %v721, %v860
        %v897 = vmul.f32 %v725, %v856
        %v898 = vmul.f32 %v725, %v860
        %v899 = vmul.f32 %v729, %v856
        %v900 = vmul.f32 %v729, %v860
        %v901 = vmul.f32 %v733, %v856
        %v902 = vmul.f32 %v733, %v860
        %v903 = vmul.f32 %v737, %v856
        %v904 = vmul.f32 %v737, %v860
        %v905 = vmul.f32 %v741, %v856
        %v906 = vmul.f32 %v741, %v860
        %v907 = vmul.f32 %v745, %v856
        %v908 = vmul.f32 %v745, %v860
        %v909 = vmul.f32 %v749, %v856
        %v910 = vmul.f32 %v749, %v860
        %v911 = vmul.f32 %v753, %v856
        %v912 = vmul.f32 %v753, %v860
        %v913 = vmul.f32 %v757, %v856
        %v914 = vmul.f32 %v757, %v860
        %v915 = vmul.f32 %v761, %v856
        %v916 = vmul.f32 %v761, %v860
        %v917 = vmul.f32 %v765, %v856
        %v918 = vmul.f32 %v765, %v860
        %v919 = vmul.f32 %v769, %v856
        %v920 = vmul.f32 %v769, %v860
        %v921 = vmul.f32 %v773, %v856
        %v922 = vmul.f32 %v773, %v860
        %v923 = vmul.f32 %v777, %v856
        %v924 = vmul.f32 %v777, %v860
        %v925 = vmul.f32 %v781, %v856
        %v926 = vmul.f32 %v781, %v860
        %v927 = vmul.f32 %v785, %v856
        %v928 = vmul.f32 %v785, %v860
        %v929 = vmul.f32 %v789, %v856
        %v930 = vmul.f32 %v789, %v860
        %v931 = vmul.f32 %v793, %v856
        %v932 = vmul.f32 %v793, %v860
        %v933 = vmul.f32 %v797, %v856
        %v934 = vmul.f32 %v797, %v860
        %v935 = vmul.f32 %v801, %v856
        %v936 = vmul.f32 %v801, %v860
        %v937 = vmul.f32 %v805, %v856
        %v938 = vmul.f32 %v805, %v860
        %v939 = vmul.f32 %v809, %v856
        %v940 = vmul.f32 %v809, %v860
        %v941 = vmul.f32 %v813, %v856
        %v942 = vmul.f32 %v813, %v860
        %v943 = vmul.f32 %v817, %v856
        %v944 = vmul.f32 %v817, %v860
        %v945 = vmul.f32 %v821, %v856
        %v946 = vmul.f32 %v821, %v860
        %v947 = vmul.f32 %v825, %v856
        %v948 = vmul.f32 %v825, %v860
        %v949 = vmul.f32 %v829, %v856
        %v950 = vmul.f32 %v829, %v860
        %v951 = vmul.f32 %v833, %v856
        %v952 = vmul.f32 %v833, %v860
        %v953 = vmul.f32 %v837, %v856
        %v954 = vmul.f32 %v837, %v860
        %v955 = vmul.f32 %v841, %v856
        %v956 = vmul.f32 %v841, %v860
        %v957 = vadd.f32 %v555, %v861
        %v958 = vadd.f32 %v556, %v862
        %v959 = vadd.f32 %v557, %v863
        %v960 = vadd.f32 %v558, %v864
        %v961 = vadd.f32 %v559, %v865
        %v962 = vadd.f32 %v560, %v866
        %v963 = vadd.f32 %v561, %v867
        %v964 = vadd.f32 %v562, %v868
        %v965 = vadd.f32 %v563, %v869
        %v966 = vadd.f32 %v564, %v870
        %v967 = vadd.f32 %v565, %v871
        %v968 = vadd.f32 %v566, %v872
        %v969 = vadd.f32 %v567, %v873
        %v970 = vadd.f32 %v568, %v874
        %v971 = vadd.f32 %v569, %v875
        %v972 = vadd.f32 %v570, %v876
        %v973 = vadd.f32 %v571, %v877
        %v974 = vadd.f32 %v572, %v878
        %v975 = vadd.f32 %v573, %v879
        %v976 = vadd.f32 %v574, %v880
        %v977 = vadd.f32 %v575, %v881
        %v978 = vadd.f32 %v576, %v882
        %v979 = vadd.f32 %v577, %v883
        %v980 = vadd.f32 %v578, %v884
        %v981 = vadd.f32 %v579, %v885
        %v982 = vadd.f32 %v580, %v886
        %v983 = vadd.f32 %v581, %v887
        %v984 = vadd.f32 %v582, %v888
        %v985 = vadd.f32 %v583, %v889
        %v986 = vadd.f32 %v584, %v890
        %v987 = vadd.f32 %v585, %v891
        %v988 = vadd.f32 %v586, %v892
        %v989 = vadd.f32 %v587, %v893
        %v990 = vadd.f32 %v588, %v894
        %v991 = vadd.f32 %v589, %v895
        %v992 = vadd.f32 %v590, %v896
        %v993 = vadd.f32 %v591, %v897
        %v994 = vadd.f32 %v592, %v898
        %v995 = vadd.f32 %v593, %v899
        %v996 = vadd.f32 %v594, %v900
        %v997 = vadd.f32 %v595, %v901
        %v998 = vadd.f32 %v596, %v902
        %v999 = vadd.f32 %v597, %v903
        %v1000 = vadd.f32 %v598, %v904
        %v1001 = vadd.f32 %v599, %v905
        %v1002 = vadd.f32 %v600, %v906
        %v1003 = vadd.f32 %v601, %v907
        %v1004 = vadd.f32 %v602, %v908
        %v1005 = vadd.f32 %v603, %v909
        %v1006 = vadd.f32 %v604, %v910
        %v1007 = vadd.f32 %v605, %v911
        %v1008 = vadd.f32 %v606, %v912
        %v1009 = vadd.f32 %v607, %v913
        %v1010 = vadd.f32 %v608, %v914
        %v1011 = vadd.f32 %v609, %v915
        %v1012 = vadd.f32 %v610, %v916
        %v1013 = vadd.f32 %v611, %v917
        %v1014 = vadd.f32 %v612, %v918
        %v1015 = vadd.f32 %v613, %v919
        %v1016 = vadd.f32 %v614, %v920
        %v1017 = vadd.f32 %v615, %v921
        %v1018 = vadd.f32 %v616, %v922
        %v1019 = vadd.f32 %v617, %v923
        %v1020 = vadd.f32 %v618, %v924
        %v1021 = vadd.f32 %v619, %v925
        %v1022 = vadd.f32 %v620, %v926
        %v1023 = vadd.f32 %v621, %v927
        %v1024 = vadd.f32 %v622, %v928
        %v1025 = vadd.f32 %v623, %v929
        %v1026 = vadd.f32 %v624, %v930
        %v1027 = vadd.f32 %v625, %v931
        %v1028 = vadd.f32 %v626, %v932
        %v1029 = vadd.f32 %v627, %v933
        %v1030 = vadd.f32 %v628, %v934
        %v1031 = vadd.f32 %v629, %v935
        %v1032 = vadd.f32 %v630, %v936
        %v1033 = vadd.f32 %v631, %v937
        %v1034 = vadd.f32 %v632, %v938
        %v1035 = vadd.f32 %v633, %v939
        %v1036 = vadd.f32 %v634, %v940
        %v1037 = vadd.f32 %v635, %v941
        %v1038 = vadd.f32 %v636, %v942
        %v1039 = vadd.f32 %v637, %v943
        %v1040 = vadd.f32 %v638, %v944
        %v1041 = vadd.f32 %v639, %v945
        %v1042 = vadd.f32 %v640, %v946
        %v1043 = vadd.f32 %v641, %v947
        %v1044 = vadd.f32 %v642, %v948
        %v1045 = vadd.f32 %v643, %v949
        %v1046 = vadd.f32 %v644, %v950
        %v1047 = vadd.f32 %v645, %v951
        %v1048 = vadd.f32 %v646, %v952
        %v1049 = vadd.f32 %v647, %v953
        %v1050 = vadd.f32 %v648, %v954
        %v1051 = vadd.f32 %v649, %v955
        %v1052 = vadd.f32 %v650, %v956
        %1053 = vset.pattern.permute.xlu0 2
        %1054 = vperm.xlu0 %1053, %v247
        %v1055 = vpop.permute.xlu0 %1054
        %1057 = vset.pattern.permute.xlu0 2
        %1058 = vperm.xlu0 %1057, %v248
        %v1059 = vpop.permute.xlu0 %1058
        %1061 = vset.pattern.permute.xlu0 2
        %1062 = vperm.xlu0 %1061, %v249
        %v1063 = vpop.permute.xlu0 %1062
        %1065 = vset.pattern.permute.xlu0 2
        %1066 = vperm.xlu0 %1065, %v250
        %v1067 = vpop.permute.xlu0 %1066
        %1069 = vset.pattern.permute.xlu0 2
        %1070 = vperm.xlu0 %1069, %v251
        %v1071 = vpop.permute.xlu0 %1070
        %1073 = vset.pattern.permute.xlu0 2
        %1074 = vperm.xlu0 %1073, %v252
        %v1075 = vpop.permute.xlu0 %1074
        %1077 = vset.pattern.permute.xlu0 2
        %1078 = vperm.xlu0 %1077, %v253
        %v1079 = vpop.permute.xlu0 %1078
        %1081 = vset.pattern.permute.xlu0 2
        %1082 = vperm.xlu0 %1081, %v254
        %v1083 = vpop.permute.xlu0 %1082
        %1085 = vset.pattern.permute.xlu0 2
        %1086 = vperm.xlu0 %1085, %v255
        %v1087 = vpop.permute.xlu0 %1086
        %1089 = vset.pattern.permute.xlu0 2
        %1090 = vperm.xlu0 %1089, %v256
        %v1091 = vpop.permute.xlu0 %1090
        %1093 = vset.pattern.permute.xlu0 2
        %1094 = vperm.xlu0 %1093, %v257
        %v1095 = vpop.permute.xlu0 %1094
        %1097 = vset.pattern.permute.xlu0 2
        %1098 = vperm.xlu0 %1097, %v258
        %v1099 = vpop.permute.xlu0 %1098
        %1101 = vset.pattern.permute.xlu0 2
        %1102 = vperm.xlu0 %1101, %v259
        %v1103 = vpop.permute.xlu0 %1102
        %1105 = vset.pattern.permute.xlu0 2
        %1106 = vperm.xlu0 %1105, %v260
        %v1107 = vpop.permute.xlu0 %1106
        %1109 = vset.pattern.permute.xlu0 2
        %1110 = vperm.xlu0 %1109, %v261
        %v1111 = vpop.permute.xlu0 %1110
        %1113 = vset.pattern.permute.xlu0 2
        %1114 = vperm.xlu0 %1113, %v262
        %v1115 = vpop.permute.xlu0 %1114
        %1117 = vset.pattern.permute.xlu0 2
        %1118 = vperm.xlu0 %1117, %v263
        %v1119 = vpop.permute.xlu0 %1118
        %1121 = vset.pattern.permute.xlu0 2
        %1122 = vperm.xlu0 %1121, %v264
        %v1123 = vpop.permute.xlu0 %1122
        %1125 = vset.pattern.permute.xlu0 2
        %1126 = vperm.xlu0 %1125, %v265
        %v1127 = vpop.permute.xlu0 %1126
        %1129 = vset.pattern.permute.xlu0 2
        %1130 = vperm.xlu0 %1129, %v266
        %v1131 = vpop.permute.xlu0 %1130
        %1133 = vset.pattern.permute.xlu0 2
        %1134 = vperm.xlu0 %1133, %v267
        %v1135 = vpop.permute.xlu0 %1134
        %1137 = vset.pattern.permute.xlu0 2
        %1138 = vperm.xlu0 %1137, %v268
        %v1139 = vpop.permute.xlu0 %1138
        %1141 = vset.pattern.permute.xlu0 2
        %1142 = vperm.xlu0 %1141, %v269
        %v1143 = vpop.permute.xlu0 %1142
        %1145 = vset.pattern.permute.xlu0 2
        %1146 = vperm.xlu0 %1145, %v270
        %v1147 = vpop.permute.xlu0 %1146
        %1149 = vset.pattern.permute.xlu0 2
        %1150 = vperm.xlu0 %1149, %v271
        %v1151 = vpop.permute.xlu0 %1150
        %1153 = vset.pattern.permute.xlu0 2
        %1154 = vperm.xlu0 %1153, %v272
        %v1155 = vpop.permute.xlu0 %1154
        %1157 = vset.pattern.permute.xlu0 2
        %1158 = vperm.xlu0 %1157, %v273
        %v1159 = vpop.permute.xlu0 %1158
        %1161 = vset.pattern.permute.xlu0 2
        %1162 = vperm.xlu0 %1161, %v274
        %v1163 = vpop.permute.xlu0 %1162
        %1165 = vset.pattern.permute.xlu0 2
        %1166 = vperm.xlu0 %1165, %v275
        %v1167 = vpop.permute.xlu0 %1166
        %1169 = vset.pattern.permute.xlu0 2
        %1170 = vperm.xlu0 %1169, %v276
        %v1171 = vpop.permute.xlu0 %1170
        %1173 = vset.pattern.permute.xlu0 2
        %1174 = vperm.xlu0 %1173, %v277
        %v1175 = vpop.permute.xlu0 %1174
        %1177 = vset.pattern.permute.xlu0 2
        %1178 = vperm.xlu0 %1177, %v278
        %v1179 = vpop.permute.xlu0 %1178
        %1181 = vset.pattern.permute.xlu0 2
        %1182 = vperm.xlu0 %1181, %v279
        %v1183 = vpop.permute.xlu0 %1182
        %1185 = vset.pattern.permute.xlu0 2
        %1186 = vperm.xlu0 %1185, %v280
        %v1187 = vpop.permute.xlu0 %1186
        %1189 = vset.pattern.permute.xlu0 2
        %1190 = vperm.xlu0 %1189, %v281
        %v1191 = vpop.permute.xlu0 %1190
        %1193 = vset.pattern.permute.xlu0 2
        %1194 = vperm.xlu0 %1193, %v282
        %v1195 = vpop.permute.xlu0 %1194
        %1197 = vset.pattern.permute.xlu0 2
        %1198 = vperm.xlu0 %1197, %v283
        %v1199 = vpop.permute.xlu0 %1198
        %1201 = vset.pattern.permute.xlu0 2
        %1202 = vperm.xlu0 %1201, %v284
        %v1203 = vpop.permute.xlu0 %1202
        %1205 = vset.pattern.permute.xlu0 2
        %1206 = vperm.xlu0 %1205, %v285
        %v1207 = vpop.permute.xlu0 %1206
        %1209 = vset.pattern.permute.xlu0 2
        %1210 = vperm.xlu0 %1209, %v286
        %v1211 = vpop.permute.xlu0 %1210
        %1213 = vset.pattern.permute.xlu0 2
        %1214 = vperm.xlu0 %1213, %v287
        %v1215 = vpop.permute.xlu0 %1214
        %1217 = vset.pattern.permute.xlu0 2
        %1218 = vperm.xlu0 %1217, %v288
        %v1219 = vpop.permute.xlu0 %1218
        %1221 = vset.pattern.permute.xlu0 2
        %1222 = vperm.xlu0 %1221, %v289
        %v1223 = vpop.permute.xlu0 %1222
        %1225 = vset.pattern.permute.xlu0 2
        %1226 = vperm.xlu0 %1225, %v290
        %v1227 = vpop.permute.xlu0 %1226
        %1229 = vset.pattern.permute.xlu0 2
        %1230 = vperm.xlu0 %1229, %v291
        %v1231 = vpop.permute.xlu0 %1230
        %1233 = vset.pattern.permute.xlu0 2
        %1234 = vperm.xlu0 %1233, %v292
        %v1235 = vpop.permute.xlu0 %1234
        %1237 = vset.pattern.permute.xlu0 2
        %1238 = vperm.xlu0 %1237, %v293
        %v1239 = vpop.permute.xlu0 %1238
        %1241 = vset.pattern.permute.xlu0 2
        %1242 = vperm.xlu0 %1241, %v294
        %v1243 = vpop.permute.xlu0 %1242
        %v1245 = vlaneseq
        %v1246 = vshrl.u32 %v1245, 7
        %v1247 = vsub.s32 2, %v1246
        %v1248 = vrot.slane %v295, %v1247
        %v1249 = vlaneseq
        %v1250 = vshrl.u32 %v1249, 7
        %v1251 = vsub.s32 6, %v1250
        %v1252 = vrot.slane %v295, %v1251
        %v1255 = vlaneseq
        %v1256 = vshrl.u32 %v1255, 7
        %v1257 = vsub.s32 2, %v1256
        %v1258 = vrot.slane %v1248, %v1257
        %v1259 = vlaneseq
        %v1260 = vshrl.u32 %v1259, 7
        %v1261 = vsub.s32 2, %v1260
        %v1262 = vrot.slane %v1252, %v1261
        %v1263 = vmul.f32 %v1055, %v1258
        %v1264 = vmul.f32 %v1055, %v1262
        %v1265 = vmul.f32 %v1059, %v1258
        %v1266 = vmul.f32 %v1059, %v1262
        %v1267 = vmul.f32 %v1063, %v1258
        %v1268 = vmul.f32 %v1063, %v1262
        %v1269 = vmul.f32 %v1067, %v1258
        %v1270 = vmul.f32 %v1067, %v1262
        %v1271 = vmul.f32 %v1071, %v1258
        %v1272 = vmul.f32 %v1071, %v1262
        %v1273 = vmul.f32 %v1075, %v1258
        %v1274 = vmul.f32 %v1075, %v1262
        %v1275 = vmul.f32 %v1079, %v1258
        %v1276 = vmul.f32 %v1079, %v1262
        %v1277 = vmul.f32 %v1083, %v1258
        %v1278 = vmul.f32 %v1083, %v1262
        %v1279 = vmul.f32 %v1087, %v1258
        %v1280 = vmul.f32 %v1087, %v1262
        %v1281 = vmul.f32 %v1091, %v1258
        %v1282 = vmul.f32 %v1091, %v1262
        %v1283 = vmul.f32 %v1095, %v1258
        %v1284 = vmul.f32 %v1095, %v1262
        %v1285 = vmul.f32 %v1099, %v1258
        %v1286 = vmul.f32 %v1099, %v1262
        %v1287 = vmul.f32 %v1103, %v1258
        %v1288 = vmul.f32 %v1103, %v1262
        %v1289 = vmul.f32 %v1107, %v1258
        %v1290 = vmul.f32 %v1107, %v1262
        %v1291 = vmul.f32 %v1111, %v1258
        %v1292 = vmul.f32 %v1111, %v1262
        %v1293 = vmul.f32 %v1115, %v1258
        %v1294 = vmul.f32 %v1115, %v1262
        %v1295 = vmul.f32 %v1119, %v1258
        %v1296 = vmul.f32 %v1119, %v1262
        %v1297 = vmul.f32 %v1123, %v1258
        %v1298 = vmul.f32 %v1123, %v1262
        %v1299 = vmul.f32 %v1127, %v1258
        %v1300 = vmul.f32 %v1127, %v1262
        %v1301 = vmul.f32 %v1131, %v1258
        %v1302 = vmul.f32 %v1131, %v1262
        %v1303 = vmul.f32 %v1135, %v1258
        %v1304 = vmul.f32 %v1135, %v1262
        %v1305 = vmul.f32 %v1139, %v1258
        %v1306 = vmul.f32 %v1139, %v1262
        %v1307 = vmul.f32 %v1143, %v1258
        %v1308 = vmul.f32 %v1143, %v1262
        %v1309 = vmul.f32 %v1147, %v1258
        %v1310 = vmul.f32 %v1147, %v1262
        %v1311 = vmul.f32 %v1151, %v1258
        %v1312 = vmul.f32 %v1151, %v1262
        %v1313 = vmul.f32 %v1155, %v1258
        %v1314 = vmul.f32 %v1155, %v1262
        %v1315 = vmul.f32 %v1159, %v1258
        %v1316 = vmul.f32 %v1159, %v1262
        %v1317 = vmul.f32 %v1163, %v1258
        %v1318 = vmul.f32 %v1163, %v1262
        %v1319 = vmul.f32 %v1167, %v1258
        %v1320 = vmul.f32 %v1167, %v1262
        %v1321 = vmul.f32 %v1171, %v1258
        %v1322 = vmul.f32 %v1171, %v1262
        %v1323 = vmul.f32 %v1175, %v1258
        %v1324 = vmul.f32 %v1175, %v1262
        %v1325 = vmul.f32 %v1179, %v1258
        %v1326 = vmul.f32 %v1179, %v1262
        %v1327 = vmul.f32 %v1183, %v1258
        %v1328 = vmul.f32 %v1183, %v1262
        %v1329 = vmul.f32 %v1187, %v1258
        %v1330 = vmul.f32 %v1187, %v1262
        %v1331 = vmul.f32 %v1191, %v1258
        %v1332 = vmul.f32 %v1191, %v1262
        %v1333 = vmul.f32 %v1195, %v1258
        %v1334 = vmul.f32 %v1195, %v1262
        %v1335 = vmul.f32 %v1199, %v1258
        %v1336 = vmul.f32 %v1199, %v1262
        %v1337 = vmul.f32 %v1203, %v1258
        %v1338 = vmul.f32 %v1203, %v1262
        %v1339 = vmul.f32 %v1207, %v1258
        %v1340 = vmul.f32 %v1207, %v1262
        %v1341 = vmul.f32 %v1211, %v1258
        %v1342 = vmul.f32 %v1211, %v1262
        %v1343 = vmul.f32 %v1215, %v1258
        %v1344 = vmul.f32 %v1215, %v1262
        %v1345 = vmul.f32 %v1219, %v1258
        %v1346 = vmul.f32 %v1219, %v1262
        %v1347 = vmul.f32 %v1223, %v1258
        %v1348 = vmul.f32 %v1223, %v1262
        %v1349 = vmul.f32 %v1227, %v1258
        %v1350 = vmul.f32 %v1227, %v1262
        %v1351 = vmul.f32 %v1231, %v1258
        %v1352 = vmul.f32 %v1231, %v1262
        %v1353 = vmul.f32 %v1235, %v1258
        %v1354 = vmul.f32 %v1235, %v1262
        %v1355 = vmul.f32 %v1239, %v1258
        %v1356 = vmul.f32 %v1239, %v1262
        %v1357 = vmul.f32 %v1243, %v1258
        %v1358 = vmul.f32 %v1243, %v1262
        %v1359 = vadd.f32 %v957, %v1263
        %v1360 = vadd.f32 %v958, %v1264
        %v1361 = vadd.f32 %v959, %v1265
        %v1362 = vadd.f32 %v960, %v1266
        %v1363 = vadd.f32 %v961, %v1267
        %v1364 = vadd.f32 %v962, %v1268
        %v1365 = vadd.f32 %v963, %v1269
        %v1366 = vadd.f32 %v964, %v1270
        %v1367 = vadd.f32 %v965, %v1271
        %v1368 = vadd.f32 %v966, %v1272
        %v1369 = vadd.f32 %v967, %v1273
        %v1370 = vadd.f32 %v968, %v1274
        %v1371 = vadd.f32 %v969, %v1275
        %v1372 = vadd.f32 %v970, %v1276
        %v1373 = vadd.f32 %v971, %v1277
        %v1374 = vadd.f32 %v972, %v1278
        %v1375 = vadd.f32 %v973, %v1279
        %v1376 = vadd.f32 %v974, %v1280
        %v1377 = vadd.f32 %v975, %v1281
        %v1378 = vadd.f32 %v976, %v1282
        %v1379 = vadd.f32 %v977, %v1283
        %v1380 = vadd.f32 %v978, %v1284
        %v1381 = vadd.f32 %v979, %v1285
        %v1382 = vadd.f32 %v980, %v1286
        %v1383 = vadd.f32 %v981, %v1287
        %v1384 = vadd.f32 %v982, %v1288
        %v1385 = vadd.f32 %v983, %v1289
        %v1386 = vadd.f32 %v984, %v1290
        %v1387 = vadd.f32 %v985, %v1291
        %v1388 = vadd.f32 %v986, %v1292
        %v1389 = vadd.f32 %v987, %v1293
        %v1390 = vadd.f32 %v988, %v1294
        %v1391 = vadd.f32 %v989, %v1295
        %v1392 = vadd.f32 %v990, %v1296
        %v1393 = vadd.f32 %v991, %v1297
        %v1394 = vadd.f32 %v992, %v1298
        %v1395 = vadd.f32 %v993, %v1299
        %v1396 = vadd.f32 %v994, %v1300
        %v1397 = vadd.f32 %v995, %v1301
        %v1398 = vadd.f32 %v996, %v1302
        %v1399 = vadd.f32 %v997, %v1303
        %v1400 = vadd.f32 %v998, %v1304
        %v1401 = vadd.f32 %v999, %v1305
        %v1402 = vadd.f32 %v1000, %v1306
        %v1403 = vadd.f32 %v1001, %v1307
        %v1404 = vadd.f32 %v1002, %v1308
        %v1405 = vadd.f32 %v1003, %v1309
        %v1406 = vadd.f32 %v1004, %v1310
        %v1407 = vadd.f32 %v1005, %v1311
        %v1408 = vadd.f32 %v1006, %v1312
        %v1409 = vadd.f32 %v1007, %v1313
        %v1410 = vadd.f32 %v1008, %v1314
        %v1411 = vadd.f32 %v1009, %v1315
        %v1412 = vadd.f32 %v1010, %v1316
        %v1413 = vadd.f32 %v1011, %v1317
        %v1414 = vadd.f32 %v1012, %v1318
        %v1415 = vadd.f32 %v1013, %v1319
        %v1416 = vadd.f32 %v1014, %v1320
        %v1417 = vadd.f32 %v1015, %v1321
        %v1418 = vadd.f32 %v1016, %v1322
        %v1419 = vadd.f32 %v1017, %v1323
        %v1420 = vadd.f32 %v1018, %v1324
        %v1421 = vadd.f32 %v1019, %v1325
        %v1422 = vadd.f32 %v1020, %v1326
        %v1423 = vadd.f32 %v1021, %v1327
        %v1424 = vadd.f32 %v1022, %v1328
        %v1425 = vadd.f32 %v1023, %v1329
        %v1426 = vadd.f32 %v1024, %v1330
        %v1427 = vadd.f32 %v1025, %v1331
        %v1428 = vadd.f32 %v1026, %v1332
        %v1429 = vadd.f32 %v1027, %v1333
        %v1430 = vadd.f32 %v1028, %v1334
        %v1431 = vadd.f32 %v1029, %v1335
        %v1432 = vadd.f32 %v1030, %v1336
        %v1433 = vadd.f32 %v1031, %v1337
        %v1434 = vadd.f32 %v1032, %v1338
        %v1435 = vadd.f32 %v1033, %v1339
        %v1436 = vadd.f32 %v1034, %v1340
        %v1437 = vadd.f32 %v1035, %v1341
        %v1438 = vadd.f32 %v1036, %v1342
        %v1439 = vadd.f32 %v1037, %v1343
        %v1440 = vadd.f32 %v1038, %v1344
        %v1441 = vadd.f32 %v1039, %v1345
        %v1442 = vadd.f32 %v1040, %v1346
        %v1443 = vadd.f32 %v1041, %v1347
        %v1444 = vadd.f32 %v1042, %v1348
        %v1445 = vadd.f32 %v1043, %v1349
        %v1446 = vadd.f32 %v1044, %v1350
        %v1447 = vadd.f32 %v1045, %v1351
        %v1448 = vadd.f32 %v1046, %v1352
        %v1449 = vadd.f32 %v1047, %v1353
        %v1450 = vadd.f32 %v1048, %v1354
        %v1451 = vadd.f32 %v1049, %v1355
        %v1452 = vadd.f32 %v1050, %v1356
        %v1453 = vadd.f32 %v1051, %v1357
        %v1454 = vadd.f32 %v1052, %v1358
        %v1455 = vld [vmem:[%s2] sm:$0x3]
        %v1457 = vlaneseq
        %v1458 = vshrl.u32 %v1457, 7
        %v1459 = vsub.s32 0, %v1458
        %v1460 = vrot.slane %v1455, %v1459
        %v1461 = vlaneseq
        %v1462 = vshrl.u32 %v1461, 7
        %v1463 = vsub.s32 1, %v1462
        %v1464 = vrot.slane %v1455, %v1463
        %v1467 = vadd.f32 %v1359, %v1460
        %v1468 = vadd.f32 %v1360, %v1464
        %v1469 = vadd.f32 %v1361, %v1460
        %v1470 = vadd.f32 %v1362, %v1464
        %v1471 = vadd.f32 %v1363, %v1460
        %v1472 = vadd.f32 %v1364, %v1464
        %v1473 = vadd.f32 %v1365, %v1460
        %v1474 = vadd.f32 %v1366, %v1464
        %v1475 = vadd.f32 %v1367, %v1460
        %v1476 = vadd.f32 %v1368, %v1464
        %v1477 = vadd.f32 %v1369, %v1460
        %v1478 = vadd.f32 %v1370, %v1464
        %v1479 = vadd.f32 %v1371, %v1460
        %v1480 = vadd.f32 %v1372, %v1464
        %v1481 = vadd.f32 %v1373, %v1460
        %v1482 = vadd.f32 %v1374, %v1464
        %v1483 = vadd.f32 %v1375, %v1460
        %v1484 = vadd.f32 %v1376, %v1464
        %v1485 = vadd.f32 %v1377, %v1460
        %v1486 = vadd.f32 %v1378, %v1464
        %v1487 = vadd.f32 %v1379, %v1460
        %v1488 = vadd.f32 %v1380, %v1464
        %v1489 = vadd.f32 %v1381, %v1460
        %v1490 = vadd.f32 %v1382, %v1464
        %v1491 = vadd.f32 %v1383, %v1460
        %v1492 = vadd.f32 %v1384, %v1464
        %v1493 = vadd.f32 %v1385, %v1460
        %v1494 = vadd.f32 %v1386, %v1464
        %v1495 = vadd.f32 %v1387, %v1460
        %v1496 = vadd.f32 %v1388, %v1464
        %v1497 = vadd.f32 %v1389, %v1460
        %v1498 = vadd.f32 %v1390, %v1464
        %v1499 = vadd.f32 %v1391, %v1460
        %v1500 = vadd.f32 %v1392, %v1464
        %v1501 = vadd.f32 %v1393, %v1460
        %v1502 = vadd.f32 %v1394, %v1464
        %v1503 = vadd.f32 %v1395, %v1460
        %v1504 = vadd.f32 %v1396, %v1464
        %v1505 = vadd.f32 %v1397, %v1460
        %v1506 = vadd.f32 %v1398, %v1464
        %v1507 = vadd.f32 %v1399, %v1460
        %v1508 = vadd.f32 %v1400, %v1464
        %v1509 = vadd.f32 %v1401, %v1460
        %v1510 = vadd.f32 %v1402, %v1464
        %v1511 = vadd.f32 %v1403, %v1460
        %v1512 = vadd.f32 %v1404, %v1464
        %v1513 = vadd.f32 %v1405, %v1460
        %v1514 = vadd.f32 %v1406, %v1464
        %v1515 = vadd.f32 %v1407, %v1460
        %v1516 = vadd.f32 %v1408, %v1464
        %v1517 = vadd.f32 %v1409, %v1460
        %v1518 = vadd.f32 %v1410, %v1464
        %v1519 = vadd.f32 %v1411, %v1460
        %v1520 = vadd.f32 %v1412, %v1464
        %v1521 = vadd.f32 %v1413, %v1460
        %v1522 = vadd.f32 %v1414, %v1464
        %v1523 = vadd.f32 %v1415, %v1460
        %v1524 = vadd.f32 %v1416, %v1464
        %v1525 = vadd.f32 %v1417, %v1460
        %v1526 = vadd.f32 %v1418, %v1464
        %v1527 = vadd.f32 %v1419, %v1460
        %v1528 = vadd.f32 %v1420, %v1464
        %v1529 = vadd.f32 %v1421, %v1460
        %v1530 = vadd.f32 %v1422, %v1464
        %v1531 = vadd.f32 %v1423, %v1460
        %v1532 = vadd.f32 %v1424, %v1464
        %v1533 = vadd.f32 %v1425, %v1460
        %v1534 = vadd.f32 %v1426, %v1464
        %v1535 = vadd.f32 %v1427, %v1460
        %v1536 = vadd.f32 %v1428, %v1464
        %v1537 = vadd.f32 %v1429, %v1460
        %v1538 = vadd.f32 %v1430, %v1464
        %v1539 = vadd.f32 %v1431, %v1460
        %v1540 = vadd.f32 %v1432, %v1464
        %v1541 = vadd.f32 %v1433, %v1460
        %v1542 = vadd.f32 %v1434, %v1464
        %v1543 = vadd.f32 %v1435, %v1460
        %v1544 = vadd.f32 %v1436, %v1464
        %v1545 = vadd.f32 %v1437, %v1460
        %v1546 = vadd.f32 %v1438, %v1464
        %v1547 = vadd.f32 %v1439, %v1460
        %v1548 = vadd.f32 %v1440, %v1464
        %v1549 = vadd.f32 %v1441, %v1460
        %v1550 = vadd.f32 %v1442, %v1464
        %v1551 = vadd.f32 %v1443, %v1460
        %v1552 = vadd.f32 %v1444, %v1464
        %v1553 = vadd.f32 %v1445, %v1460
        %v1554 = vadd.f32 %v1446, %v1464
        %v1555 = vadd.f32 %v1447, %v1460
        %v1556 = vadd.f32 %v1448, %v1464
        %v1557 = vadd.f32 %v1449, %v1460
        %v1558 = vadd.f32 %v1450, %v1464
        %v1559 = vadd.f32 %v1451, %v1460
        %v1560 = vadd.f32 %v1452, %v1464
        %v1561 = vadd.f32 %v1453, %v1460
        %v1562 = vadd.f32 %v1454, %v1464
        %v1563 = vmax.f32 %v1467, 0.0
        %v1564 = vmax.f32 %v1468, 0.0
        %v1565 = vmax.f32 %v1469, 0.0
        %v1566 = vmax.f32 %v1470, 0.0
        %v1567 = vmax.f32 %v1471, 0.0
        %v1568 = vmax.f32 %v1472, 0.0
        %v1569 = vmax.f32 %v1473, 0.0
        %v1570 = vmax.f32 %v1474, 0.0
        %v1571 = vmax.f32 %v1475, 0.0
        %v1572 = vmax.f32 %v1476, 0.0
        %v1573 = vmax.f32 %v1477, 0.0
        %v1574 = vmax.f32 %v1478, 0.0
        %v1575 = vmax.f32 %v1479, 0.0
        %v1576 = vmax.f32 %v1480, 0.0
        %v1577 = vmax.f32 %v1481, 0.0
        %v1578 = vmax.f32 %v1482, 0.0
        %v1579 = vmax.f32 %v1483, 0.0
        %v1580 = vmax.f32 %v1484, 0.0
        %v1581 = vmax.f32 %v1485, 0.0
        %v1582 = vmax.f32 %v1486, 0.0
        %v1583 = vmax.f32 %v1487, 0.0
        %v1584 = vmax.f32 %v1488, 0.0
        %v1585 = vmax.f32 %v1489, 0.0
        %v1586 = vmax.f32 %v1490, 0.0
        %v1587 = vmax.f32 %v1491, 0.0
        %v1588 = vmax.f32 %v1492, 0.0
        %v1589 = vmax.f32 %v1493, 0.0
        %v1590 = vmax.f32 %v1494, 0.0
        %v1591 = vmax.f32 %v1495, 0.0
        %v1592 = vmax.f32 %v1496, 0.0
        %v1593 = vmax.f32 %v1497, 0.0
        %v1594 = vmax.f32 %v1498, 0.0
        %v1595 = vmax.f32 %v1499, 0.0
        %v1596 = vmax.f32 %v1500, 0.0
        %v1597 = vmax.f32 %v1501, 0.0
        %v1598 = vmax.f32 %v1502, 0.0
        %v1599 = vmax.f32 %v1503, 0.0
        %v1600 = vmax.f32 %v1504, 0.0
        %v1601 = vmax.f32 %v1505, 0.0
        %v1602 = vmax.f32 %v1506, 0.0
        %v1603 = vmax.f32 %v1507, 0.0
        %v1604 = vmax.f32 %v1508, 0.0
        %v1605 = vmax.f32 %v1509, 0.0
        %v1606 = vmax.f32 %v1510, 0.0
        %v1607 = vmax.f32 %v1511, 0.0
        %v1608 = vmax.f32 %v1512, 0.0
        %v1609 = vmax.f32 %v1513, 0.0
        %v1610 = vmax.f32 %v1514, 0.0
        %v1611 = vmax.f32 %v1515, 0.0
        %v1612 = vmax.f32 %v1516, 0.0
        %v1613 = vmax.f32 %v1517, 0.0
        %v1614 = vmax.f32 %v1518, 0.0
        %v1615 = vmax.f32 %v1519, 0.0
        %v1616 = vmax.f32 %v1520, 0.0
        %v1617 = vmax.f32 %v1521, 0.0
        %v1618 = vmax.f32 %v1522, 0.0
        %v1619 = vmax.f32 %v1523, 0.0
        %v1620 = vmax.f32 %v1524, 0.0
        %v1621 = vmax.f32 %v1525, 0.0
        %v1622 = vmax.f32 %v1526, 0.0
        %v1623 = vmax.f32 %v1527, 0.0
        %v1624 = vmax.f32 %v1528, 0.0
        %v1625 = vmax.f32 %v1529, 0.0
        %v1626 = vmax.f32 %v1530, 0.0
        %v1627 = vmax.f32 %v1531, 0.0
        %v1628 = vmax.f32 %v1532, 0.0
        %v1629 = vmax.f32 %v1533, 0.0
        %v1630 = vmax.f32 %v1534, 0.0
        %v1631 = vmax.f32 %v1535, 0.0
        %v1632 = vmax.f32 %v1536, 0.0
        %v1633 = vmax.f32 %v1537, 0.0
        %v1634 = vmax.f32 %v1538, 0.0
        %v1635 = vmax.f32 %v1539, 0.0
        %v1636 = vmax.f32 %v1540, 0.0
        %v1637 = vmax.f32 %v1541, 0.0
        %v1638 = vmax.f32 %v1542, 0.0
        %v1639 = vmax.f32 %v1543, 0.0
        %v1640 = vmax.f32 %v1544, 0.0
        %v1641 = vmax.f32 %v1545, 0.0
        %v1642 = vmax.f32 %v1546, 0.0
        %v1643 = vmax.f32 %v1547, 0.0
        %v1644 = vmax.f32 %v1548, 0.0
        %v1645 = vmax.f32 %v1549, 0.0
        %v1646 = vmax.f32 %v1550, 0.0
        %v1647 = vmax.f32 %v1551, 0.0
        %v1648 = vmax.f32 %v1552, 0.0
        %v1649 = vmax.f32 %v1553, 0.0
        %v1650 = vmax.f32 %v1554, 0.0
        %v1651 = vmax.f32 %v1555, 0.0
        %v1652 = vmax.f32 %v1556, 0.0
        %v1653 = vmax.f32 %v1557, 0.0
        %v1654 = vmax.f32 %v1558, 0.0
        %v1655 = vmax.f32 %v1559, 0.0
        %v1656 = vmax.f32 %v1560, 0.0
        %v1657 = vmax.f32 %v1561, 0.0
        %v1658 = vmax.f32 %v1562, 0.0
        %v1659 = vpack.c.bf16 %v1565, %v1563
        %v1660 = vpack.c.bf16 %v1566, %v1564
        %v1661 = vpack.c.bf16 %v1569, %v1567
        %v1662 = vpack.c.bf16 %v1570, %v1568
        %v1663 = vpack.c.bf16 %v1573, %v1571
        %v1664 = vpack.c.bf16 %v1574, %v1572
        %v1665 = vpack.c.bf16 %v1577, %v1575
        %v1666 = vpack.c.bf16 %v1578, %v1576
        %v1667 = vpack.c.bf16 %v1581, %v1579
        %v1668 = vpack.c.bf16 %v1582, %v1580
        %v1669 = vpack.c.bf16 %v1585, %v1583
        %v1670 = vpack.c.bf16 %v1586, %v1584
        %v1671 = vpack.c.bf16 %v1589, %v1587
        %v1672 = vpack.c.bf16 %v1590, %v1588
        %v1673 = vpack.c.bf16 %v1593, %v1591
        %v1674 = vpack.c.bf16 %v1594, %v1592
        %v1675 = vpack.c.bf16 %v1597, %v1595
        %v1676 = vpack.c.bf16 %v1598, %v1596
        %v1677 = vpack.c.bf16 %v1601, %v1599
        %v1678 = vpack.c.bf16 %v1602, %v1600
        %v1679 = vpack.c.bf16 %v1605, %v1603
        %v1680 = vpack.c.bf16 %v1606, %v1604
        %v1681 = vpack.c.bf16 %v1609, %v1607
        %v1682 = vpack.c.bf16 %v1610, %v1608
        %v1683 = vpack.c.bf16 %v1613, %v1611
        %v1684 = vpack.c.bf16 %v1614, %v1612
        %v1685 = vpack.c.bf16 %v1617, %v1615
        %v1686 = vpack.c.bf16 %v1618, %v1616
        %v1687 = vpack.c.bf16 %v1621, %v1619
        %v1688 = vpack.c.bf16 %v1622, %v1620
        %v1689 = vpack.c.bf16 %v1625, %v1623
        %v1690 = vpack.c.bf16 %v1626, %v1624
        %v1691 = vpack.c.bf16 %v1629, %v1627
        %v1692 = vpack.c.bf16 %v1630, %v1628
        %v1693 = vpack.c.bf16 %v1633, %v1631
        %v1694 = vpack.c.bf16 %v1634, %v1632
        %v1695 = vpack.c.bf16 %v1637, %v1635
        %v1696 = vpack.c.bf16 %v1638, %v1636
        %v1697 = vpack.c.bf16 %v1641, %v1639
        %v1698 = vpack.c.bf16 %v1642, %v1640
        %v1699 = vpack.c.bf16 %v1645, %v1643
        %v1700 = vpack.c.bf16 %v1646, %v1644
        %v1701 = vpack.c.bf16 %v1649, %v1647
        %v1702 = vpack.c.bf16 %v1650, %v1648
        %v1703 = vpack.c.bf16 %v1653, %v1651
        %v1704 = vpack.c.bf16 %v1654, %v1652
        %v1705 = vpack.c.bf16 %v1657, %v1655
        %v1706 = vpack.c.bf16 %v1658, %v1656
        %v1707 = vld [vmem:[%s3] sm:$0xf]
        %v1708 = vld [vmem:[%s3 + $0x4] sm:$0xf]
        %v1709 = vld [vmem:[%s3 + $0x8] sm:$0xf]
        %v1710 = vld [vmem:[%s3 + $0xc] sm:$0xf]
        %v1711 = vld [vmem:[%s3 + $0x10] sm:$0xf]
        %v1712 = vld [vmem:[%s3 + $0x14] sm:$0xf]
        %v1713 = vld [vmem:[%s3 + $0x18] sm:$0xf]
        %v1714 = vld [vmem:[%s3 + $0x1c] sm:$0xf]
        %v1715 = vld [vmem:[%s3 + $0x20] sm:$0xf]
        %v1716 = vld [vmem:[%s3 + $0x24] sm:$0xf]
        %v1717 = vld [vmem:[%s3 + $0x28] sm:$0xf]
        %v1718 = vld [vmem:[%s3 + $0x2c] sm:$0xf]
        %v1719 = vld [vmem:[%s3 + $0x30] sm:$0xf]
        %v1720 = vld [vmem:[%s3 + $0x34] sm:$0xf]
        %v1721 = vld [vmem:[%s3 + $0x38] sm:$0xf]
        %v1722 = vld [vmem:[%s3 + $0x3c] sm:$0xf]
        %v1723 = vld [vmem:[%s3 + $0x40] sm:$0xf]
        %v1724 = vld [vmem:[%s3 + $0x44] sm:$0xf]
        %v1725 = vld [vmem:[%s3 + $0x48] sm:$0xf]
        %v1726 = vld [vmem:[%s3 + $0x4c] sm:$0xf]
        %v1727 = vld [vmem:[%s3 + $0x50] sm:$0xf]
        %v1728 = vld [vmem:[%s3 + $0x54] sm:$0xf]
        %v1729 = vld [vmem:[%s3 + $0x58] sm:$0xf]
        %v1730 = vld [vmem:[%s3 + $0x5c] sm:$0xf]
        %v1731 = vld [vmem:[%s3 + $0x60] sm:$0xf]
        %v1732 = vld [vmem:[%s3 + $0x64] sm:$0xf]
        %v1733 = vld [vmem:[%s3 + $0x68] sm:$0xf]
        %v1734 = vld [vmem:[%s3 + $0x6c] sm:$0xf]
        %v1735 = vld [vmem:[%s3 + $0x70] sm:$0xf]
        %v1736 = vld [vmem:[%s3 + $0x74] sm:$0xf]
        %v1737 = vld [vmem:[%s3 + $0x78] sm:$0xf]
        %v1738 = vld [vmem:[%s3 + $0x7c] sm:$0xf]
        %v1739 = vld [vmem:[%s4] sm:$0x1]
        %v1741 = vlaneseq
        %v1742 = vshrl.u32 %v1741, 7
        %v1743 = vsub.s32 0, %v1742
        %v1744 = vrot.slane %v1739, %v1743
        %v1778 = vunpack.c.l.b16 %v1707
        %v1779 = vunpack.c.l.b16 %v1708
        %v1780 = vunpack.c.l.b16 %v1709
        %v1781 = vunpack.c.l.b16 %v1710
        %v1782 = vunpack.c.l.b16 %v1711
        %v1783 = vunpack.c.l.b16 %v1712
        %v1784 = vunpack.c.l.b16 %v1713
        %v1785 = vunpack.c.l.b16 %v1714
        %v1786 = vunpack.c.l.b16 %v1715
        %v1787 = vunpack.c.l.b16 %v1716
        %v1788 = vunpack.c.l.b16 %v1717
        %v1789 = vunpack.c.l.b16 %v1718
        %v1790 = vunpack.c.l.b16 %v1719
        %v1791 = vunpack.c.l.b16 %v1720
        %v1792 = vunpack.c.l.b16 %v1721
        %v1793 = vunpack.c.l.b16 %v1722
        %v1794 = vunpack.c.l.b16 %v1723
        %v1795 = vunpack.c.l.b16 %v1724
        %v1796 = vunpack.c.l.b16 %v1725
        %v1797 = vunpack.c.l.b16 %v1726
        %v1798 = vunpack.c.l.b16 %v1727
        %v1799 = vunpack.c.l.b16 %v1728
        %v1800 = vunpack.c.l.b16 %v1729
        %v1801 = vunpack.c.l.b16 %v1730
        %v1802 = vunpack.c.l.b16 %v1731
        %v1803 = vunpack.c.l.b16 %v1732
        %v1804 = vunpack.c.l.b16 %v1733
        %v1805 = vunpack.c.l.b16 %v1734
        %v1806 = vunpack.c.l.b16 %v1735
        %v1807 = vunpack.c.l.b16 %v1736
        %v1808 = vunpack.c.l.b16 %v1737
        %v1809 = vunpack.c.l.b16 %v1738
        %v1810 = vpack.c.b16 %v1779, %v1778
        %v1811 = vpack.c.b16 %v1781, %v1780
        %v1812 = vpack.c.b16 %v1783, %v1782
        %v1813 = vpack.c.b16 %v1785, %v1784
        %v1814 = vpack.c.b16 %v1787, %v1786
        %v1815 = vpack.c.b16 %v1789, %v1788
        %v1816 = vpack.c.b16 %v1791, %v1790
        %v1817 = vpack.c.b16 %v1793, %v1792
        %v1818 = vpack.c.b16 %v1795, %v1794
        %v1819 = vpack.c.b16 %v1797, %v1796
        %v1820 = vpack.c.b16 %v1799, %v1798
        %v1821 = vpack.c.b16 %v1801, %v1800
        %v1822 = vpack.c.b16 %v1803, %v1802
        %v1823 = vpack.c.b16 %v1805, %v1804
        %v1824 = vpack.c.b16 %v1807, %v1806
        %v1825 = vpack.c.b16 %v1809, %v1808
        %1842 = vmatprep.subr.bf16.mxu0 0
        %1843 = vmatpush1.bf16.msra.mxu0 %v1817
        %1844 = vmatprep.subr.bf16.mxu0 0
        %1845 = vmatpush1.bf16.msra.mxu0 %v1816
        %1846 = vmatprep.subr.bf16.mxu0 0
        %1847 = vmatpush1.bf16.msra.mxu0 %v1815
        %1848 = vmatprep.subr.bf16.mxu0 0
        %1849 = vmatpush1.bf16.msra.mxu0 %v1814
        %1850 = vmatprep.subr.bf16.mxu0 0
        %1851 = vmatpush1.bf16.msra.mxu0 %v1813
        %1852 = vmatprep.subr.bf16.mxu0 0
        %1853 = vmatpush1.bf16.msra.mxu0 %v1812
        %1854 = vmatprep.subr.bf16.mxu0 0
        %1855 = vmatpush1.bf16.msra.mxu0 %v1811
        %1856 = vmatprep.subr.bf16.mxu0 0
        %1857 = vmatpush1.bf16.msra.mxu0 %v1810
        %1858 = vmatprep.subr.bf16.mxu0 0
        %1859 = vmatpush2.bf16.msra.mxu0 %v1825
        %1860 = vmatprep.subr.bf16.mxu0 0
        %1861 = vmatpush2.bf16.msra.mxu0 %v1824
        %1862 = vmatprep.subr.bf16.mxu0 0
        %1863 = vmatpush2.bf16.msra.mxu0 %v1823
        %1864 = vmatprep.subr.bf16.mxu0 0
        %1865 = vmatpush2.bf16.msra.mxu0 %v1822
        %1866 = vmatprep.subr.bf16.mxu0 0
        %1867 = vmatpush2.bf16.msra.mxu0 %v1821
        %1868 = vmatprep.subr.bf16.mxu0 0
        %1869 = vmatpush2.bf16.msra.mxu0 %v1820
        %1870 = vmatprep.subr.bf16.mxu0 0
        %1871 = vmatpush2.bf16.msra.mxu0 %v1819
        %1872 = vmatprep.subr.bf16.mxu0 0
        %1873 = vmatpush2.bf16.msra.mxu0 %v1818
        %1874 = vmatprep.mubr.bf16.mxu0 %v1660
        %1875 = vmatmul.mubr.bf16.gmra.mxu0 %v1659
        %v1876 = vpop.f32.mrf.mxu0
        %v1877 = vadd.f32 %v1744, %v1876
        %v1878 = vpop.f32.mrf.mxu0
        %v1879 = vpop.f32.mrf.mxu0
        %v1880 = vadd.f32 %v1744, %v1879
        %v1881 = vpop.f32.mrf.mxu0
        %1882 = vmatprep.mubr.bf16.mxu0 %v1662
        %1883 = vmatmul.mubr.bf16.gmra.mxu0 %v1661
        %v1884 = vpop.f32.mrf.mxu0
        %v1885 = vadd.f32 %v1744, %v1884
        %v1886 = vpop.f32.mrf.mxu0
        %v1887 = vpop.f32.mrf.mxu0
        %v1888 = vadd.f32 %v1744, %v1887
        %v1889 = vpop.f32.mrf.mxu0
        %1890 = vmatprep.mubr.bf16.mxu0 %v1664
        %1891 = vmatmul.mubr.bf16.gmra.mxu0 %v1663
        %v1892 = vpop.f32.mrf.mxu0
        %v1893 = vadd.f32 %v1744, %v1892
        %v1894 = vpop.f32.mrf.mxu0
        %v1895 = vpop.f32.mrf.mxu0
        %v1896 = vadd.f32 %v1744, %v1895
        %v1897 = vpop.f32.mrf.mxu0
        %1898 = vmatprep.mubr.bf16.mxu0 %v1666
        %1899 = vmatmul.mubr.bf16.gmra.mxu0 %v1665
        %v1900 = vpop.f32.mrf.mxu0
        %v1901 = vadd.f32 %v1744, %v1900
        %v1902 = vpop.f32.mrf.mxu0
        %v1903 = vpop.f32.mrf.mxu0
        %v1904 = vadd.f32 %v1744, %v1903
        %v1905 = vpop.f32.mrf.mxu0
        %1906 = vmatprep.mubr.bf16.mxu0 %v1668
        %1907 = vmatmul.mubr.bf16.gmra.mxu0 %v1667
        %v1908 = vpop.f32.mrf.mxu0
        %v1909 = vadd.f32 %v1744, %v1908
        %v1910 = vpop.f32.mrf.mxu0
        %v1911 = vpop.f32.mrf.mxu0
        %v1912 = vadd.f32 %v1744, %v1911
        %v1913 = vpop.f32.mrf.mxu0
        %1914 = vmatprep.mubr.bf16.mxu0 %v1670
        %1915 = vmatmul.mubr.bf16.gmra.mxu0 %v1669
        %v1916 = vpop.f32.mrf.mxu0
        %v1917 = vadd.f32 %v1744, %v1916
        %v1918 = vpop.f32.mrf.mxu0
        %v1919 = vpop.f32.mrf.mxu0
        %v1920 = vadd.f32 %v1744, %v1919
        %v1921 = vpop.f32.mrf.mxu0
        %1922 = vmatprep.mubr.bf16.mxu0 %v1672
        %1923 = vmatmul.mubr.bf16.gmra.mxu0 %v1671
        %v1924 = vpop.f32.mrf.mxu0
        %v1925 = vadd.f32 %v1744, %v1924
        %v1926 = vpop.f32.mrf.mxu0
        %v1927 = vpop.f32.mrf.mxu0
        %v1928 = vadd.f32 %v1744, %v1927
        %v1929 = vpop.f32.mrf.mxu0
        %1930 = vmatprep.mubr.bf16.mxu0 %v1674
        %1931 = vmatmul.mubr.bf16.gmra.mxu0 %v1673
        %v1932 = vpop.f32.mrf.mxu0
        %v1933 = vadd.f32 %v1744, %v1932
        %v1934 = vpop.f32.mrf.mxu0
        %v1935 = vpop.f32.mrf.mxu0
        %v1936 = vadd.f32 %v1744, %v1935
        %v1937 = vpop.f32.mrf.mxu0
        %1938 = vmatprep.mubr.bf16.mxu0 %v1676
        %1939 = vmatmul.mubr.bf16.gmra.mxu0 %v1675
        %v1940 = vpop.f32.mrf.mxu0
        %v1941 = vadd.f32 %v1744, %v1940
        %v1942 = vpop.f32.mrf.mxu0
        %v1943 = vpop.f32.mrf.mxu0
        %v1944 = vadd.f32 %v1744, %v1943
        %v1945 = vpop.f32.mrf.mxu0
        %1946 = vmatprep.mubr.bf16.mxu0 %v1678
        %1947 = vmatmul.mubr.bf16.gmra.mxu0 %v1677
        %v1948 = vpop.f32.mrf.mxu0
        %v1949 = vadd.f32 %v1744, %v1948
        %v1950 = vpop.f32.mrf.mxu0
        %v1951 = vpop.f32.mrf.mxu0
        %v1952 = vadd.f32 %v1744, %v1951
        %v1953 = vpop.f32.mrf.mxu0
        %1954 = vmatprep.mubr.bf16.mxu0 %v1680
        %1955 = vmatmul.mubr.bf16.gmra.mxu0 %v1679
        %v1956 = vpop.f32.mrf.mxu0
        %v1957 = vadd.f32 %v1744, %v1956
        %v1958 = vpop.f32.mrf.mxu0
        %v1959 = vpop.f32.mrf.mxu0
        %v1960 = vadd.f32 %v1744, %v1959
        %v1961 = vpop.f32.mrf.mxu0
        %1962 = vmatprep.mubr.bf16.mxu0 %v1682
        %1963 = vmatmul.mubr.bf16.gmra.mxu0 %v1681
        %v1964 = vpop.f32.mrf.mxu0
        %v1965 = vadd.f32 %v1744, %v1964
        %v1966 = vpop.f32.mrf.mxu0
        %v1967 = vpop.f32.mrf.mxu0
        %v1968 = vadd.f32 %v1744, %v1967
        %v1969 = vpop.f32.mrf.mxu0
        %1970 = vmatprep.mubr.bf16.mxu0 %v1684
        %1971 = vmatmul.mubr.bf16.gmra.mxu0 %v1683
        %v1972 = vpop.f32.mrf.mxu0
        %v1973 = vadd.f32 %v1744, %v1972
        %v1974 = vpop.f32.mrf.mxu0
        %v1975 = vpop.f32.mrf.mxu0
        %v1976 = vadd.f32 %v1744, %v1975
        %v1977 = vpop.f32.mrf.mxu0
        %1978 = vmatprep.mubr.bf16.mxu0 %v1686
        %1979 = vmatmul.mubr.bf16.gmra.mxu0 %v1685
        %v1980 = vpop.f32.mrf.mxu0
        %v1981 = vadd.f32 %v1744, %v1980
        %v1982 = vpop.f32.mrf.mxu0
        %v1983 = vpop.f32.mrf.mxu0
        %v1984 = vadd.f32 %v1744, %v1983
        %v1985 = vpop.f32.mrf.mxu0
        %1986 = vmatprep.mubr.bf16.mxu0 %v1688
        %1987 = vmatmul.mubr.bf16.gmra.mxu0 %v1687
        %v1988 = vpop.f32.mrf.mxu0
        %v1989 = vadd.f32 %v1744, %v1988
        %v1990 = vpop.f32.mrf.mxu0
        %v1991 = vpop.f32.mrf.mxu0
        %v1992 = vadd.f32 %v1744, %v1991
        %v1993 = vpop.f32.mrf.mxu0
        %1994 = vmatprep.mubr.bf16.mxu0 %v1690
        %1995 = vmatmul.mubr.bf16.gmra.mxu0 %v1689
        %v1996 = vpop.f32.mrf.mxu0
        %v1997 = vadd.f32 %v1744, %v1996
        %v1998 = vpop.f32.mrf.mxu0
        %v1999 = vpop.f32.mrf.mxu0
        %v2000 = vadd.f32 %v1744, %v1999
        %v2001 = vpop.f32.mrf.mxu0
        %2002 = vmatprep.mubr.bf16.mxu0 %v1692
        %2003 = vmatmul.mubr.bf16.gmra.mxu0 %v1691
        %v2004 = vpop.f32.mrf.mxu0
        %v2005 = vadd.f32 %v1744, %v2004
        %v2006 = vpop.f32.mrf.mxu0
        %v2007 = vpop.f32.mrf.mxu0
        %v2008 = vadd.f32 %v1744, %v2007
        %v2009 = vpop.f32.mrf.mxu0
        %2010 = vmatprep.mubr.bf16.mxu0 %v1694
        %2011 = vmatmul.mubr.bf16.gmra.mxu0 %v1693
        %v2012 = vpop.f32.mrf.mxu0
        %v2013 = vadd.f32 %v1744, %v2012
        %v2014 = vpop.f32.mrf.mxu0
        %v2015 = vpop.f32.mrf.mxu0
        %v2016 = vadd.f32 %v1744, %v2015
        %v2017 = vpop.f32.mrf.mxu0
        %2018 = vmatprep.mubr.bf16.mxu0 %v1696
        %2019 = vmatmul.mubr.bf16.gmra.mxu0 %v1695
        %v2020 = vpop.f32.mrf.mxu0
        %v2021 = vadd.f32 %v1744, %v2020
        %v2022 = vpop.f32.mrf.mxu0
        %v2023 = vpop.f32.mrf.mxu0
        %v2024 = vadd.f32 %v1744, %v2023
        %v2025 = vpop.f32.mrf.mxu0
        %2026 = vmatprep.mubr.bf16.mxu0 %v1698
        %2027 = vmatmul.mubr.bf16.gmra.mxu0 %v1697
        %v2028 = vpop.f32.mrf.mxu0
        %v2029 = vadd.f32 %v1744, %v2028
        %v2030 = vpop.f32.mrf.mxu0
        %v2031 = vpop.f32.mrf.mxu0
        %v2032 = vadd.f32 %v1744, %v2031
        %v2033 = vpop.f32.mrf.mxu0
        %2034 = vmatprep.mubr.bf16.mxu0 %v1700
        %2035 = vmatmul.mubr.bf16.gmra.mxu0 %v1699
        %v2036 = vpop.f32.mrf.mxu0
        %v2037 = vadd.f32 %v1744, %v2036
        %v2038 = vpop.f32.mrf.mxu0
        %v2039 = vpop.f32.mrf.mxu0
        %v2040 = vadd.f32 %v1744, %v2039
        %v2041 = vpop.f32.mrf.mxu0
        %2042 = vmatprep.mubr.bf16.mxu0 %v1702
        %2043 = vmatmul.mubr.bf16.gmra.mxu0 %v1701
        %v2044 = vpop.f32.mrf.mxu0
        %v2045 = vadd.f32 %v1744, %v2044
        %v2046 = vpop.f32.mrf.mxu0
        %v2047 = vpop.f32.mrf.mxu0
        %v2048 = vadd.f32 %v1744, %v2047
        %v2049 = vpop.f32.mrf.mxu0
        %2050 = vmatprep.mubr.bf16.mxu0 %v1704
        %2051 = vmatmul.mubr.bf16.gmra.mxu0 %v1703
        %v2052 = vpop.f32.mrf.mxu0
        %v2053 = vadd.f32 %v1744, %v2052
        %v2054 = vpop.f32.mrf.mxu0
        %v2055 = vpop.f32.mrf.mxu0
        %v2056 = vadd.f32 %v1744, %v2055
        %v2057 = vpop.f32.mrf.mxu0
        %2058 = vmatprep.mubr.bf16.mxu0 %v1706
        %2059 = vmatmul.mubr.bf16.gmra.mxu0 %v1705
        %v2060 = vpop.f32.mrf.mxu0
        %v2061 = vadd.f32 %v1744, %v2060
        %v2062 = vpop.f32.mrf.mxu0
        %v2063 = vpop.f32.mrf.mxu0
        %v2064 = vadd.f32 %v1744, %v2063
        %v2065 = vpop.f32.mrf.mxu0
        %2066 = vdwg.mxu0
        %vm2067 = vcmask 883712
        %2068 = vst.msk [vmem:[%s226] sm:$0xff] %vm2067, %v1877
        %2069 = vst.msk [vmem:[%s226 + $0x8] sm:$0xff] %vm2067, %v1880
        %2070 = vst.msk [vmem:[%s226 + $0x10] sm:$0xff] %vm2067, %v1885
        %2071 = vst.msk [vmem:[%s226 + $0x18] sm:$0xff] %vm2067, %v1888
        %2072 = vst.msk [vmem:[%s226 + $0x20] sm:$0xff] %vm2067, %v1893
        %2073 = vst.msk [vmem:[%s226 + $0x28] sm:$0xff] %vm2067, %v1896
        %2074 = vst.msk [vmem:[%s226 + $0x30] sm:$0xff] %vm2067, %v1901
        %2075 = vst.msk [vmem:[%s226 + $0x38] sm:$0xff] %vm2067, %v1904
        %2076 = vst.msk [vmem:[%s226 + $0x40] sm:$0xff] %vm2067, %v1909
        %2077 = vst.msk [vmem:[%s226 + $0x48] sm:$0xff] %vm2067, %v1912
        %2078 = vst.msk [vmem:[%s226 + $0x50] sm:$0xff] %vm2067, %v1917
        %2079 = vst.msk [vmem:[%s226 + $0x58] sm:$0xff] %vm2067, %v1920
        %2080 = vst.msk [vmem:[%s226 + $0x60] sm:$0xff] %vm2067, %v1925
        %2081 = vst.msk [vmem:[%s226 + $0x68] sm:$0xff] %vm2067, %v1928
        %2082 = vst.msk [vmem:[%s226 + $0x70] sm:$0xff] %vm2067, %v1933
        %2083 = vst.msk [vmem:[%s226 + $0x78] sm:$0xff] %vm2067, %v1936
        %2084 = vst.msk [vmem:[%s226 + $0x80] sm:$0xff] %vm2067, %v1941
        %2085 = vst.msk [vmem:[%s226 + $0x88] sm:$0xff] %vm2067, %v1944
        %2086 = vst.msk [vmem:[%s226 + $0x90] sm:$0xff] %vm2067, %v1949
        %2087 = vst.msk [vmem:[%s226 + $0x98] sm:$0xff] %vm2067, %v1952
        %2088 = vst.msk [vmem:[%s226 + $0xa0] sm:$0xff] %vm2067, %v1957
        %2089 = vst.msk [vmem:[%s226 + $0xa8] sm:$0xff] %vm2067, %v1960
        %2090 = vst.msk [vmem:[%s226 + $0xb0] sm:$0xff] %vm2067, %v1965
        %2091 = vst.msk [vmem:[%s226 + $0xb8] sm:$0xff] %vm2067, %v1968
        %2092 = vst.msk [vmem:[%s226 + $0xc0] sm:$0xff] %vm2067, %v1973
        %2093 = vst.msk [vmem:[%s226 + $0xc8] sm:$0xff] %vm2067, %v1976
        %2094 = vst.msk [vmem:[%s226 + $0xd0] sm:$0xff] %vm2067, %v1981
        %2095 = vst.msk [vmem:[%s226 + $0xd8] sm:$0xff] %vm2067, %v1984
        %2096 = vst.msk [vmem:[%s226 + $0xe0] sm:$0xff] %vm2067, %v1989
        %2097 = vst.msk [vmem:[%s226 + $0xe8] sm:$0xff] %vm2067, %v1992
        %2098 = vst.msk [vmem:[%s226 + $0xf0] sm:$0xff] %vm2067, %v1997
        %2099 = vst.msk [vmem:[%s226 + $0xf8] sm:$0xff] %vm2067, %v2000
        %2100 = vst.msk [vmem:[%s226 + $0x100] sm:$0xff] %vm2067, %v2005
        %2101 = vst.msk [vmem:[%s226 + $0x108] sm:$0xff] %vm2067, %v2008
        %2102 = vst.msk [vmem:[%s226 + $0x110] sm:$0xff] %vm2067, %v2013
        %2103 = vst.msk [vmem:[%s226 + $0x118] sm:$0xff] %vm2067, %v2016
        %2104 = vst.msk [vmem:[%s226 + $0x120] sm:$0xff] %vm2067, %v2021
        %2105 = vst.msk [vmem:[%s226 + $0x128] sm:$0xff] %vm2067, %v2024
        %2106 = vst.msk [vmem:[%s226 + $0x130] sm:$0xff] %vm2067, %v2029
        %2107 = vst.msk [vmem:[%s226 + $0x138] sm:$0xff] %vm2067, %v2032
        %2108 = vst.msk [vmem:[%s226 + $0x140] sm:$0xff] %vm2067, %v2037
        %2109 = vst.msk [vmem:[%s226 + $0x148] sm:$0xff] %vm2067, %v2040
        %2110 = vst.msk [vmem:[%s226 + $0x150] sm:$0xff] %vm2067, %v2045
        %2111 = vst.msk [vmem:[%s226 + $0x158] sm:$0xff] %vm2067, %v2048
        %2112 = vst.msk [vmem:[%s226 + $0x160] sm:$0xff] %vm2067, %v2053
        %2113 = vst.msk [vmem:[%s226 + $0x168] sm:$0xff] %vm2067, %v2056
        %2114 = vst.msk [vmem:[%s226 + $0x170] sm:$0xff] %vm2067, %v2061
        %2115 = vst.msk [vmem:[%s226 + $0x178] sm:$0xff] %vm2067, %v2064
        %s2116 = sand.u32 %s134, 1
        %s2117 = sand.u32 %s134, 1
        %s2118 = smul.addr %s2117, 384
        %s2119 = scalar_lea.vmem [#allocation2], %s2118
        // Predicated region
        $region41: #{tpu_custom_call.1} parent=39 // pred_check
          %p2120 = pneg %p144
        $region42: #{tpu_custom_call.1} parent=39 // pred_check_branch
          %2122 = sbr.rel (%p2120) target = $region44
        $region43: #{tpu_custom_call.1} parent=39 // pred_region
          %s2123 = smul.u32 48, %s16
          %s2124 = ssub.s32 75, %s2123
          %p2125 = scmp.lt.s32.totalorder %s2124, 48
          %s2126 = scalar_select %p2125, %s2124, 48
          %s2127 = smul.u32 128, %s2126
          %p2128 = scmp.ne.s32.totalorder 0, %s2127
          %s2129 = smul.addr %s2123, 8
          %s2130 = scalar_lea.vmem %s5, %s2129
          // Predicated region
          $region45: #{tpu_custom_call.1} parent=43 // pred_check
            %p2131 = pneg %p2128
          $region46: #{tpu_custom_call.1} parent=43 // pred_check_branch
            %2133 = sbr.rel (%p2131) target = $region48
          $region47: #{tpu_custom_call.1} parent=43 // pred_region
            // Predicated region
            $region49: #{tpu_custom_call.1} parent=47 // pred_check
              _
            $region50: #{tpu_custom_call.1} parent=47 // pred_check_branch
              %2135 = sbr.rel (0) target = $region52
            $region51: #{tpu_custom_call.1} parent=47 // pred_region
              // Predicated region
              $region71: #{tpu_custom_call.1} parent=51 // pred_check
                _
              $region72: #{tpu_custom_call.1} parent=51 // pred_check_branch
                %2280 = sbr.rel (0) target = $region74
              $region73: #{tpu_custom_call.1} parent=51 // pred_region
                %s2281 = sdiv.u32.pop %s2126, 48
                %s2282 = srem.u32.pop %s2126, 48
                // While loop
                $region75: #{tpu_custom_call.1} parent=73 // loop_pre_header
                  _
                $region76: #{tpu_custom_call.1} parent=73 // loop_header
                  %s2284 = sphi 0, %s2286
                  %p2285 = scmp.ge.s32.totalorder %s2284, %s2281
                  %s2289 = sphi 0, %s2390
                  %s2290 = sphi %s2119, %s2393
                  %s2291 = sphi %s2130, %s2394
                $region77: #{tpu_custom_call.1} parent=73 // loop_header_branch
                  %2288 = sbr.rel (%p2285) target = $region81
                $region78: #{tpu_custom_call.1} parent=73 // loop_body
                  %v2292 = vld [vmem:[%s2290] sm:$0xff]
                  %2293 = vst [vmem:[%s2291] sm:$0xff] %v2292
                  %v2294 = vld [vmem:[%s2290 + $0x8] sm:$0xff]
                  %2295 = vst [vmem:[%s2291 + $0x8] sm:$0xff] %v2294
                  %v2296 = vld [vmem:[%s2290 + $0x10] sm:$0xff]
                  %2297 = vst [vmem:[%s2291 + $0x10] sm:$0xff] %v2296
                  %v2298 = vld [vmem:[%s2290 + $0x18] sm:$0xff]
                  %2299 = vst [vmem:[%s2291 + $0x18] sm:$0xff] %v2298
                  %v2300 = vld [vmem:[%s2290 + $0x20] sm:$0xff]
                  %2301 = vst [vmem:[%s2291 + $0x20] sm:$0xff] %v2300
                  %v2302 = vld [vmem:[%s2290 + $0x28] sm:$0xff]
                  %2303 = vst [vmem:[%s2291 + $0x28] sm:$0xff] %v2302
                  %v2304 = vld [vmem:[%s2290 + $0x30] sm:$0xff]
                  %2305 = vst [vmem:[%s2291 + $0x30] sm:$0xff] %v2304
                  %v2306 = vld [vmem:[%s2290 + $0x38] sm:$0xff]
                  %2307 = vst [vmem:[%s2291 + $0x38] sm:$0xff] %v2306
                  %v2308 = vld [vmem:[%s2290 + $0x40] sm:$0xff]
                  %2309 = vst [vmem:[%s2291 + $0x40] sm:$0xff] %v2308
                  %v2310 = vld [vmem:[%s2290 + $0x48] sm:$0xff]
                  %2311 = vst [vmem:[%s2291 + $0x48] sm:$0xff] %v2310
                  %v2312 = vld [vmem:[%s2290 + $0x50] sm:$0xff]
                  %2313 = vst [vmem:[%s2291 + $0x50] sm:$0xff] %v2312
                  %v2314 = vld [vmem:[%s2290 + $0x58] sm:$0xff]
                  %2315 = vst [vmem:[%s2291 + $0x58] sm:$0xff] %v2314
                  %v2316 = vld [vmem:[%s2290 + $0x60] sm:$0xff]
                  %2317 = vst [vmem:[%s2291 + $0x60] sm:$0xff] %v2316
                  %v2318 = vld [vmem:[%s2290 + $0x68] sm:$0xff]
                  %2319 = vst [vmem:[%s2291 + $0x68] sm:$0xff] %v2318
                  %v2320 = vld [vmem:[%s2290 + $0x70] sm:$0xff]
                  %2321 = vst [vmem:[%s2291 + $0x70] sm:$0xff] %v2320
                  %v2322 = vld [vmem:[%s2290 + $0x78] sm:$0xff]
                  %2323 = vst [vmem:[%s2291 + $0x78] sm:$0xff] %v2322
                  %v2324 = vld [vmem:[%s2290 + $0x80] sm:$0xff]
                  %2325 = vst [vmem:[%s2291 + $0x80] sm:$0xff] %v2324
                  %v2326 = vld [vmem:[%s2290 + $0x88] sm:$0xff]
                  %2327 = vst [vmem:[%s2291 + $0x88] sm:$0xff] %v2326
                  %v2328 = vld [vmem:[%s2290 + $0x90] sm:$0xff]
                  %2329 = vst [vmem:[%s2291 + $0x90] sm:$0xff] %v2328
                  %v2330 = vld [vmem:[%s2290 + $0x98] sm:$0xff]
                  %2331 = vst [vmem:[%s2291 + $0x98] sm:$0xff] %v2330
                  %v2332 = vld [vmem:[%s2290 + $0xa0] sm:$0xff]
                  %2333 = vst [vmem:[%s2291 + $0xa0] sm:$0xff] %v2332
                  %v2334 = vld [vmem:[%s2290 + $0xa8] sm:$0xff]
                  %2335 = vst [vmem:[%s2291 + $0xa8] sm:$0xff] %v2334
                  %v2336 = vld [vmem:[%s2290 + $0xb0] sm:$0xff]
                  %2337 = vst [vmem:[%s2291 + $0xb0] sm:$0xff] %v2336
                  %v2338 = vld [vmem:[%s2290 + $0xb8] sm:$0xff]
                  %2339 = vst [vmem:[%s2291 + $0xb8] sm:$0xff] %v2338
                  %v2340 = vld [vmem:[%s2290 + $0xc0] sm:$0xff]
                  %2341 = vst [vmem:[%s2291 + $0xc0] sm:$0xff] %v2340
                  %v2342 = vld [vmem:[%s2290 + $0xc8] sm:$0xff]
                  %2343 = vst [vmem:[%s2291 + $0xc8] sm:$0xff] %v2342
                  %v2344 = vld [vmem:[%s2290 + $0xd0] sm:$0xff]
                  %2345 = vst [vmem:[%s2291 + $0xd0] sm:$0xff] %v2344
                  %v2346 = vld [vmem:[%s2290 + $0xd8] sm:$0xff]
                  %2347 = vst [vmem:[%s2291 + $0xd8] sm:$0xff] %v2346
                  %v2348 = vld [vmem:[%s2290 + $0xe0] sm:$0xff]
                  %2349 = vst [vmem:[%s2291 + $0xe0] sm:$0xff] %v2348
                  %v2350 = vld [vmem:[%s2290 + $0xe8] sm:$0xff]
                  %2351 = vst [vmem:[%s2291 + $0xe8] sm:$0xff] %v2350
                  %v2352 = vld [vmem:[%s2290 + $0xf0] sm:$0xff]
                  %2353 = vst [vmem:[%s2291 + $0xf0] sm:$0xff] %v2352
                  %v2354 = vld [vmem:[%s2290 + $0xf8] sm:$0xff]
                  %2355 = vst [vmem:[%s2291 + $0xf8] sm:$0xff] %v2354
                  %v2356 = vld [vmem:[%s2290 + $0x100] sm:$0xff]
                  %2357 = vst [vmem:[%s2291 + $0x100] sm:$0xff] %v2356
                  %v2358 = vld [vmem:[%s2290 + $0x108] sm:$0xff]
                  %2359 = vst [vmem:[%s2291 + $0x108] sm:$0xff] %v2358
                  %v2360 = vld [vmem:[%s2290 + $0x110] sm:$0xff]
                  %2361 = vst [vmem:[%s2291 + $0x110] sm:$0xff] %v2360
                  %v2362 = vld [vmem:[%s2290 + $0x118] sm:$0xff]
                  %2363 = vst [vmem:[%s2291 + $0x118] sm:$0xff] %v2362
                  %v2364 = vld [vmem:[%s2290 + $0x120] sm:$0xff]
                  %2365 = vst [vmem:[%s2291 + $0x120] sm:$0xff] %v2364
                  %v2366 = vld [vmem:[%s2290 + $0x128] sm:$0xff]
                  %2367 = vst [vmem:[%s2291 + $0x128] sm:$0xff] %v2366
                  %v2368 = vld [vmem:[%s2290 + $0x130] sm:$0xff]
                  %2369 = vst [vmem:[%s2291 + $0x130] sm:$0xff] %v2368
                  %v2370 = vld [vmem:[%s2290 + $0x138] sm:$0xff]
                  %2371 = vst [vmem:[%s2291 + $0x138] sm:$0xff] %v2370
                  %v2372 = vld [vmem:[%s2290 + $0x140] sm:$0xff]
                  %2373 = vst [vmem:[%s2291 + $0x140] sm:$0xff] %v2372
                  %v2374 = vld [vmem:[%s2290 + $0x148] sm:$0xff]
                  %2375 = vst [vmem:[%s2291 + $0x148] sm:$0xff] %v2374
                  %v2376 = vld [vmem:[%s2290 + $0x150] sm:$0xff]
                  %2377 = vst [vmem:[%s2291 + $0x150] sm:$0xff] %v2376
                  %v2378 = vld [vmem:[%s2290 + $0x158] sm:$0xff]
                  %2379 = vst [vmem:[%s2291 + $0x158] sm:$0xff] %v2378
                  %v2380 = vld [vmem:[%s2290 + $0x160] sm:$0xff]
                  %2381 = vst [vmem:[%s2291 + $0x160] sm:$0xff] %v2380
                  %v2382 = vld [vmem:[%s2290 + $0x168] sm:$0xff]
                  %2383 = vst [vmem:[%s2291 + $0x168] sm:$0xff] %v2382
                  %v2384 = vld [vmem:[%s2290 + $0x170] sm:$0xff]
                  %2385 = vst [vmem:[%s2291 + $0x170] sm:$0xff] %v2384
                  %v2386 = vld [vmem:[%s2290 + $0x178] sm:$0xff]
                  %2387 = vst [vmem:[%s2291 + $0x178] sm:$0xff] %v2386
                  %s2388 = sadd.s32 1, %s2289
                  %p2389 = scmp.ge.s32.totalorder %s2388, %s2281
                  %s2390 = scalar_select %p2389, 0, %s2388
                  %s2391 = smul.u32 %s2390, 384
                  %s2392 = smul.u32 %s2390, 384
                  %s2393 = scalar_lea.vmem %s2119, %s2391 [#allocation2]
                  %s2394 = scalar_lea.vmem %s2130, %s2392
                $region79: #{tpu_custom_call.1} parent=73 // loop_footer
                  %s2286 = sadd.s32 %s2284, 1
                $region80: #{tpu_custom_call.1} parent=73 // loop_footer_branch
                  %2283 = sbr.rel target = $region76
                $region81: #{tpu_custom_call.1} parent=73 // loop_exit
                  _
                %s2395 = sdiv.u32.pop %s2126, 48
                %s2396 = srem.u32.pop %s2126, 48
                %s2397 = smul.u32 %s2395, 48
                %s2398 = smul.u32 8, %s2397
                %s2399 = scalar_lea.vmem %s2119, %s2398 [#allocation2]
                %s2400 = smul.u32 8, %s2397
                %s2401 = scalar_lea.vmem %s2130, %s2400
                // While loop
                $region82: #{tpu_custom_call.1} parent=73 // loop_pre_header
                  _
                $region83: #{tpu_custom_call.1} parent=73 // loop_header
                  %s2403 = sphi 0, %s2405
                  %p2404 = scmp.ge.s32.totalorder %s2403, %s2396
                  %s2408 = sphi 0, %s2415
                  %s2409 = sphi %s2399, %s2418
                  %s2410 = sphi %s2401, %s2419
                $region84: #{tpu_custom_call.1} parent=73 // loop_header_branch
                  %2407 = sbr.rel (%p2404) target = $region88
                $region85: #{tpu_custom_call.1} parent=73 // loop_body
                  %v2411 = vld [vmem:[%s2409] sm:$0xff]
                  %2412 = vst [vmem:[%s2410] sm:$0xff] %v2411
                  %s2413 = sadd.s32 1, %s2408
                  %p2414 = scmp.ge.s32.totalorder %s2413, %s2396
                  %s2415 = scalar_select %p2414, 0, %s2413
                  %s2416 = smul.u32 %s2415, 8
                  %s2417 = smul.u32 %s2415, 8
                  %s2418 = scalar_lea.vmem %s2399, %s2416 [#allocation2]
                  %s2419 = scalar_lea.vmem %s2401, %s2417
                $region86: #{tpu_custom_call.1} parent=73 // loop_footer
                  %s2405 = sadd.s32 %s2403, 1
                $region87: #{tpu_custom_call.1} parent=73 // loop_footer_branch
                  %2402 = sbr.rel target = $region83
                $region88: #{tpu_custom_call.1} parent=73 // loop_exit
                  _
              $region74: #{tpu_custom_call.1} parent=51 // pred_fallthru
                _
              // Predicated region
              $region89: #{tpu_custom_call.1} parent=51 // pred_check
                _
              $region90: #{tpu_custom_call.1} parent=51 // pred_check_branch
                %2421 = sbr.rel target = $region92
              $region91: #{tpu_custom_call.1} parent=51 // pred_region
                _
              $region92: #{tpu_custom_call.1} parent=51 // pred_fallthru
                _
            $region52: #{tpu_custom_call.1} parent=47 // pred_fallthru
              _
            // Predicated region
            $region53: #{tpu_custom_call.1} parent=47 // pred_check
              _
            $region54: #{tpu_custom_call.1} parent=47 // pred_check_branch
              %2137 = sbr.rel target = $region56
            $region55: #{tpu_custom_call.1} parent=47 // pred_region
              %s2139 = ssub.s32 256, 1
              %s2140 = sdiv.u32.pop %s2126, 48
              %s2141 = srem.u32.pop %s2126, 48
              // While loop
              $region57: #{tpu_custom_call.1} parent=55 // loop_pre_header
                _
              $region58: #{tpu_custom_call.1} parent=55 // loop_header
                %s2143 = sphi 0, %s2145
                %p2144 = scmp.ge.s32.totalorder %s2143, %s2140
                %s2148 = sphi 0, %s2249
                %s2149 = sphi %s2119, %s2252
                %s2150 = sphi %s2130, %s2253
              $region59: #{tpu_custom_call.1} parent=55 // loop_header_branch
                %2147 = sbr.rel (%p2144) target = $region63
              $region60: #{tpu_custom_call.1} parent=55 // loop_body
                %v2151 = vld [vmem:[%s2149] sm:%s2139]
                %2152 = vst [vmem:[%s2150] sm:%s2139] %v2151
                %v2153 = vld [vmem:[%s2149 + $0x8] sm:%s2139]
                %2154 = vst [vmem:[%s2150 + $0x8] sm:%s2139] %v2153
                %v2155 = vld [vmem:[%s2149 + $0x10] sm:%s2139]
                %2156 = vst [vmem:[%s2150 + $0x10] sm:%s2139] %v2155
                %v2157 = vld [vmem:[%s2149 + $0x18] sm:%s2139]
                %2158 = vst [vmem:[%s2150 + $0x18] sm:%s2139] %v2157
                %v2159 = vld [vmem:[%s2149 + $0x20] sm:%s2139]
                %2160 = vst [vmem:[%s2150 + $0x20] sm:%s2139] %v2159
                %v2161 = vld [vmem:[%s2149 + $0x28] sm:%s2139]
                %2162 = vst [vmem:[%s2150 + $0x28] sm:%s2139] %v2161
                %v2163 = vld [vmem:[%s2149 + $0x30] sm:%s2139]
                %2164 = vst [vmem:[%s2150 + $0x30] sm:%s2139] %v2163
                %v2165 = vld [vmem:[%s2149 + $0x38] sm:%s2139]
                %2166 = vst [vmem:[%s2150 + $0x38] sm:%s2139] %v2165
                %v2167 = vld [vmem:[%s2149 + $0x40] sm:%s2139]
                %2168 = vst [vmem:[%s2150 + $0x40] sm:%s2139] %v2167
                %v2169 = vld [vmem:[%s2149 + $0x48] sm:%s2139]
                %2170 = vst [vmem:[%s2150 + $0x48] sm:%s2139] %v2169
                %v2171 = vld [vmem:[%s2149 + $0x50] sm:%s2139]
                %2172 = vst [vmem:[%s2150 + $0x50] sm:%s2139] %v2171
                %v2173 = vld [vmem:[%s2149 + $0x58] sm:%s2139]
                %2174 = vst [vmem:[%s2150 + $0x58] sm:%s2139] %v2173
                %v2175 = vld [vmem:[%s2149 + $0x60] sm:%s2139]
                %2176 = vst [vmem:[%s2150 + $0x60] sm:%s2139] %v2175
                %v2177 = vld [vmem:[%s2149 + $0x68] sm:%s2139]
                %2178 = vst [vmem:[%s2150 + $0x68] sm:%s2139] %v2177
                %v2179 = vld [vmem:[%s2149 + $0x70] sm:%s2139]
                %2180 = vst [vmem:[%s2150 + $0x70] sm:%s2139] %v2179
                %v2181 = vld [vmem:[%s2149 + $0x78] sm:%s2139]
                %2182 = vst [vmem:[%s2150 + $0x78] sm:%s2139] %v2181
                %v2183 = vld [vmem:[%s2149 + $0x80] sm:%s2139]
                %2184 = vst [vmem:[%s2150 + $0x80] sm:%s2139] %v2183
                %v2185 = vld [vmem:[%s2149 + $0x88] sm:%s2139]
                %2186 = vst [vmem:[%s2150 + $0x88] sm:%s2139] %v2185
                %v2187 = vld [vmem:[%s2149 + $0x90] sm:%s2139]
                %2188 = vst [vmem:[%s2150 + $0x90] sm:%s2139] %v2187
                %v2189 = vld [vmem:[%s2149 + $0x98] sm:%s2139]
                %2190 = vst [vmem:[%s2150 + $0x98] sm:%s2139] %v2189
                %v2191 = vld [vmem:[%s2149 + $0xa0] sm:%s2139]
                %2192 = vst [vmem:[%s2150 + $0xa0] sm:%s2139] %v2191
                %v2193 = vld [vmem:[%s2149 + $0xa8] sm:%s2139]
                %2194 = vst [vmem:[%s2150 + $0xa8] sm:%s2139] %v2193
                %v2195 = vld [vmem:[%s2149 + $0xb0] sm:%s2139]
                %2196 = vst [vmem:[%s2150 + $0xb0] sm:%s2139] %v2195
                %v2197 = vld [vmem:[%s2149 + $0xb8] sm:%s2139]
                %2198 = vst [vmem:[%s2150 + $0xb8] sm:%s2139] %v2197
                %v2199 = vld [vmem:[%s2149 + $0xc0] sm:%s2139]
                %2200 = vst [vmem:[%s2150 + $0xc0] sm:%s2139] %v2199
                %v2201 = vld [vmem:[%s2149 + $0xc8] sm:%s2139]
                %2202 = vst [vmem:[%s2150 + $0xc8] sm:%s2139] %v2201
                %v2203 = vld [vmem:[%s2149 + $0xd0] sm:%s2139]
                %2204 = vst [vmem:[%s2150 + $0xd0] sm:%s2139] %v2203
                %v2205 = vld [vmem:[%s2149 + $0xd8] sm:%s2139]
                %2206 = vst [vmem:[%s2150 + $0xd8] sm:%s2139] %v2205
                %v2207 = vld [vmem:[%s2149 + $0xe0] sm:%s2139]
                %2208 = vst [vmem:[%s2150 + $0xe0] sm:%s2139] %v2207
                %v2209 = vld [vmem:[%s2149 + $0xe8] sm:%s2139]
                %2210 = vst [vmem:[%s2150 + $0xe8] sm:%s2139] %v2209
                %v2211 = vld [vmem:[%s2149 + $0xf0] sm:%s2139]
                %2212 = vst [vmem:[%s2150 + $0xf0] sm:%s2139] %v2211
                %v2213 = vld [vmem:[%s2149 + $0xf8] sm:%s2139]
                %2214 = vst [vmem:[%s2150 + $0xf8] sm:%s2139] %v2213
                %v2215 = vld [vmem:[%s2149 + $0x100] sm:%s2139]
                %2216 = vst [vmem:[%s2150 + $0x100] sm:%s2139] %v2215
                %v2217 = vld [vmem:[%s2149 + $0x108] sm:%s2139]
                %2218 = vst [vmem:[%s2150 + $0x108] sm:%s2139] %v2217
                %v2219 = vld [vmem:[%s2149 + $0x110] sm:%s2139]
                %2220 = vst [vmem:[%s2150 + $0x110] sm:%s2139] %v2219
                %v2221 = vld [vmem:[%s2149 + $0x118] sm:%s2139]
                %2222 = vst [vmem:[%s2150 + $0x118] sm:%s2139] %v2221
                %v2223 = vld [vmem:[%s2149 + $0x120] sm:%s2139]
                %2224 = vst [vmem:[%s2150 + $0x120] sm:%s2139] %v2223
                %v2225 = vld [vmem:[%s2149 + $0x128] sm:%s2139]
                %2226 = vst [vmem:[%s2150 + $0x128] sm:%s2139] %v2225
                %v2227 = vld [vmem:[%s2149 + $0x130] sm:%s2139]
                %2228 = vst [vmem:[%s2150 + $0x130] sm:%s2139] %v2227
                %v2229 = vld [vmem:[%s2149 + $0x138] sm:%s2139]
                %2230 = vst [vmem:[%s2150 + $0x138] sm:%s2139] %v2229
                %v2231 = vld [vmem:[%s2149 + $0x140] sm:%s2139]
                %2232 = vst [vmem:[%s2150 + $0x140] sm:%s2139] %v2231
                %v2233 = vld [vmem:[%s2149 + $0x148] sm:%s2139]
                %2234 = vst [vmem:[%s2150 + $0x148] sm:%s2139] %v2233
                %v2235 = vld [vmem:[%s2149 + $0x150] sm:%s2139]
                %2236 = vst [vmem:[%s2150 + $0x150] sm:%s2139] %v2235
                %v2237 = vld [vmem:[%s2149 + $0x158] sm:%s2139]
                %2238 = vst [vmem:[%s2150 + $0x158] sm:%s2139] %v2237
                %v2239 = vld [vmem:[%s2149 + $0x160] sm:%s2139]
                %2240 = vst [vmem:[%s2150 + $0x160] sm:%s2139] %v2239
                %v2241 = vld [vmem:[%s2149 + $0x168] sm:%s2139]
                %2242 = vst [vmem:[%s2150 + $0x168] sm:%s2139] %v2241
                %v2243 = vld [vmem:[%s2149 + $0x170] sm:%s2139]
                %2244 = vst [vmem:[%s2150 + $0x170] sm:%s2139] %v2243
                %v2245 = vld [vmem:[%s2149 + $0x178] sm:%s2139]
                %2246 = vst [vmem:[%s2150 + $0x178] sm:%s2139] %v2245
                %s2247 = sadd.s32 1, %s2148
                %p2248 = scmp.ge.s32.totalorder %s2247, %s2140
                %s2249 = scalar_select %p2248, 0, %s2247
                %s2250 = smul.u32 %s2249, 384
                %s2251 = smul.u32 %s2249, 384
                %s2252 = scalar_lea.vmem %s2119, %s2250 [#allocation2]
                %s2253 = scalar_lea.vmem %s2130, %s2251
              $region61: #{tpu_custom_call.1} parent=55 // loop_footer
                %s2145 = sadd.s32 %s2143, 1
              $region62: #{tpu_custom_call.1} parent=55 // loop_footer_branch
                %2142 = sbr.rel target = $region58
              $region63: #{tpu_custom_call.1} parent=55 // loop_exit
                _
              %s2254 = sdiv.u32.pop %s2126, 48
              %s2255 = srem.u32.pop %s2126, 48
              %s2256 = smul.u32 %s2254, 48
              %s2257 = smul.u32 8, %s2256
              %s2258 = scalar_lea.vmem %s2119, %s2257 [#allocation2]
              %s2259 = smul.u32 8, %s2256
              %s2260 = scalar_lea.vmem %s2130, %s2259
              // While loop
              $region64: #{tpu_custom_call.1} parent=55 // loop_pre_header
                _
              $region65: #{tpu_custom_call.1} parent=55 // loop_header
                %s2262 = sphi 0, %s2264
                %p2263 = scmp.ge.s32.totalorder %s2262, %s2255
                %s2267 = sphi 0, %s2274
                %s2268 = sphi %s2258, %s2277
                %s2269 = sphi %s2260, %s2278
              $region66: #{tpu_custom_call.1} parent=55 // loop_header_branch
                %2266 = sbr.rel (%p2263) target = $region70
              $region67: #{tpu_custom_call.1} parent=55 // loop_body
                %v2270 = vld [vmem:[%s2268] sm:%s2139]
                %2271 = vst [vmem:[%s2269] sm:%s2139] %v2270
                %s2272 = sadd.s32 1, %s2267
                %p2273 = scmp.ge.s32.totalorder %s2272, %s2255
                %s2274 = scalar_select %p2273, 0, %s2272
                %s2275 = smul.u32 %s2274, 8
                %s2276 = smul.u32 %s2274, 8
                %s2277 = scalar_lea.vmem %s2258, %s2275 [#allocation2]
                %s2278 = scalar_lea.vmem %s2260, %s2276
              $region68: #{tpu_custom_call.1} parent=55 // loop_footer
                %s2264 = sadd.s32 %s2262, 1
              $region69: #{tpu_custom_call.1} parent=55 // loop_footer_branch
                %2261 = sbr.rel target = $region65
              $region70: #{tpu_custom_call.1} parent=55 // loop_exit
                _
            $region56: #{tpu_custom_call.1} parent=47 // pred_fallthru
              _
          $region48: #{tpu_custom_call.1} parent=43 // pred_fallthru
            _
          %2422 = vnop
        $region44: #{tpu_custom_call.1} parent=39 // pred_fallthru
          _
      $region40: #{tpu_custom_call.1} parent=5 // pred_fallthru
        _
      %p2423 = scmp.le.s32.totalorder 2, %s11
      // Predicated region
      $region93: #{tpu_custom_call.1} parent=5 // pred_check
        %p2424 = pneg %p2423
      $region94: #{tpu_custom_call.1} parent=5 // pred_check_branch
        %2426 = sbr.rel (%p2424) target = $region96
      $region95: #{tpu_custom_call.1} parent=5 // pred_region
        %s2427 = ssub.s32 %s11, 2
        // Predicated region
        $region97: #{tpu_custom_call.1} parent=95 // pred_check
          %p2428 = pneg %p150
        $region98: #{tpu_custom_call.1} parent=95 // pred_check_branch
          %2430 = sbr.rel (%p2428) target = $region100
        $region99: #{tpu_custom_call.1} parent=95 // pred_region
          %s2431 = sand.u32 %s135, 1
          %s2432 = sand.u32 %s135, 1
          %s2433 = smul.addr %s2432, 384
          %s2434 = scalar_lea.vmem [#allocation2], %s2433
        $region100: #{tpu_custom_call.1} parent=95 // pred_fallthru
          _
      $region96: #{tpu_custom_call.1} parent=5 // pred_fallthru
        _
    $region6: #{tpu_custom_call.1} parent=1 // loop_footer
      %s15 = sadd.s32 1, %s11
    $region7: #{tpu_custom_call.1} parent=1 // loop_footer_branch
      %10 = sbr.rel target = $region3
    $region8: #{tpu_custom_call.1} parent=1 // loop_exit
      _

</llo_original>
